<compile_context>
chip_gen: v5e
topology: v5e:2x2
jax: 0.10.0
libtpu: 0.0.40
codegen_flags: <defaults>
</compile_context>

<pallas_src>
import functools

import jax
import jax.numpy as jnp
from jax import lax
from jax.experimental import pallas as pl
from jax.experimental.pallas import tpu as pltpu

KSIZE = 7
PAD = 3          # padding for kernel_size=7
BN_EPS = 1e-5


def _mffm_kernel(r_ref, d_ref,
                 fc1t_r_ref, fc1t_d_ref,
                 fc2_r_ref, fc2_d_ref,
                 fc2t_r_ref, fc2t_d_ref,
                 wm_ref, w1x1_r_ref, w1x1_d_ref, bias_ref,
                 o_ref, *, H, W):
    """Fused MFFM forward for one batch element (all activations lane-flattened).

    r_ref:      (1, dim_r, HW)      VMEM   rgb branch (bf16 or f32)
    d_ref:      (1, dim_d, HW)      VMEM   depth branch
    fc1t_r/d:   (dim_x, mip)        VMEM   ChannelAttention fc1^T, split per branch
    fc2_r/d:    (dim_x, mip)        VMEM   fc2 (column-gate orientation)
    fc2t_r/d:   (mip, dim_x)        VMEM   fc2^T (row-gate orientation)
    wm_ref:     (49, 1, HW)         VMEM   7x7 tap weights pre-multiplied by border masks
    w1x1_r/d:   (dim_r, dim_x)      VMEM   1x1 conv weight with BN scale & sa_conv folded
    bias_ref:   (dim_r, 1)          VMEM   folded BN shift
    o_ref:      (1, dim_r, HW)      VMEM   output (lane-dense f32 store)
    """
    HW = H * W
    r = r_ref[0].astype(jnp.float32)                                # (dim_r, HW)
    d = d_ref[0].astype(jnp.float32)                                # (dim_d, HW)

    # ---- ChannelAttention gate: sigmoid(fc2(relu(fc1(avg_pool(x))))) ----
    pooled_r = jnp.mean(r, axis=1, keepdims=True)                   # (dim_r, 1) lane reduce
    pooled_d = jnp.mean(d, axis=1, keepdims=True)                   # (dim_d, 1)
    h1 = (jnp.sum(fc1t_r_ref[...] * pooled_r, axis=0, keepdims=True)
          + jnp.sum(fc1t_d_ref[...] * pooled_d, axis=0, keepdims=True))   # (1, mip)
    h1 = jnp.maximum(h1, 0.0)
    # Column orientation (channels on sublanes): used for the channel-max.
    gate_col_r = jax.nn.sigmoid(
        jnp.sum(fc2_r_ref[...] * h1, axis=1, keepdims=True))        # (dim_r, 1)
    gate_col_d = jax.nn.sigmoid(
        jnp.sum(fc2_d_ref[...] * h1, axis=1, keepdims=True))        # (dim_d, 1)
    # Row orientation (channels on lanes): folded into the 1x1 conv weights (no
    # out1/out2 slab is kept live across the SpatialAttention tap loop).
    gate_row_r = jax.nn.sigmoid(
        jnp.dot(h1, fc2t_r_ref[...], preferred_element_type=jnp.float32))  # (1, dim_r)
    gate_row_d = jax.nn.sigmoid(
        jnp.dot(h1, fc2t_d_ref[...], preferred_element_type=jnp.float32))  # (1, dim_d)

    # ---- SpatialAttention: channel max of gated features (transient products) ----
    m = jnp.maximum(jnp.max(r * gate_col_r, axis=0, keepdims=True),
                    jnp.max(d * gate_col_d, axis=0, keepdims=True))         # (1, HW)

    # 7x7 zero-padded 'same' conv in the flattened layout: 49 static XLU lane rolls
    # times pre-masked tap-weight maps; one accumulator per kernel row + tree sum.
    row_accs = []
    for a in range(KSIZE):
        v = a - PAD                                                  # vertical offset
        acc_a = None
        for b in range(KSIZE):
            u = b - PAD                                              # horizontal offset
            shift = (-(v * W + u)) % HW                              # static, non-negative
            shifted = m if shift == 0 else pltpu.roll(m, shift=shift, axis=1)
            term = wm_ref[a * KSIZE + b] * shifted                   # (1, HW), mask pre-folded
            acc_a = term if acc_a is None else acc_a + term
        row_accs.append(acc_a)
    while len(row_accs) > 1:                                         # balanced tree sum
        nxt = [row_accs[i] + row_accs[i + 1] for i in range(0, len(row_accs) - 1, 2)]
        if len(row_accs) % 2:
            nxt.append(row_accs[-1])
        row_accs = nxt
    sig = jax.nn.sigmoid(row_accs[0])                                # (1, HW); sa_conv scalar
                                                                     # is folded into w1x1.

    # ---- conv1x1 (+ folded BN, sa_conv, channel gate) + ReLU: lane-dense MXU matmuls ----
    wg_r = w1x1_r_ref[...] * gate_row_r                              # (dim_r, dim_r)
    wg_d = w1x1_d_ref[...] * gate_row_d                              # (dim_r, dim_d)
    y = (jnp.dot(wg_r, r * sig, preferred_element_type=jnp.float32)
         + jnp.dot(wg_d, d * sig, preferred_element_type=jnp.float32))      # (dim_r, HW)
    y = jnp.maximum(y + bias_ref[...], 0.0)
    o_ref[0] = y.astype(o_ref.dtype)


def _tap_weight_maps(w7, H, W):
    """(49, 1, H*W) per-tap conv weights pre-multiplied by zero-padding border masks."""
    HW = H * W
    pos = jnp.arange(HW, dtype=jnp.int32)
    row = pos // W
    col = pos % W
    a_off = jnp.arange(KSIZE, dtype=jnp.int32)[:, None, None] - PAD      # (7,1,1)
    b_off = jnp.arange(KSIZE, dtype=jnp.int32)[None, :, None] - PAD      # (1,7,1)
    valid = ((row[None, None, :] + a_off >= 0) & (row[None, None, :] + a_off < H)
             & (col[None, None, :] + b_off >= 0) & (col[None, None, :] + b_off < W))
    wm = w7[:, :, None].astype(jnp.float32) * valid.astype(jnp.float32)   # (7,7,HW)
    return wm.reshape(KSIZE * KSIZE, 1, HW)


def mffm_forward(r, d, params, *, input_dtype=jnp.bfloat16):
    """r: (N, dim_r, H, W), d: (N, dim_d, H, W) -> (N, dim_r, H, W) float32.

    `input_dtype` controls the activation transfer dtype (bf16 halves HBM traffic and
    VMEM footprint); all in-kernel compute is float32.
    """
    N, dim_r, H, W = r.shape
    dim_d = d.shape[1]
    C = dim_r + dim_d
    HW = H * W

    # Layout plumbing only: lane-flatten spatial dims per branch (no concat in HBM).
    r_flat = r.reshape(N, dim_r, HW).astype(input_dtype)
    d_flat = d.reshape(N, dim_d, HW).astype(input_dtype)

    fc1 = params["fc1_w"].astype(jnp.float32)                        # (mip, C)
    fc2 = params["fc2_w"].astype(jnp.float32)                        # (C, mip)
    mip = fc1.shape[0]
    fc1t_r = fc1[:, :dim_r].T                                        # (dim_r, mip)
    fc1t_d = fc1[:, dim_r:].T                                        # (dim_d, mip)
    fc2_r = fc2[:dim_r]                                              # (dim_r, mip)
    fc2_d = fc2[dim_r:]                                              # (dim_d, mip)
    fc2t_r = fc2_r.T                                                 # (mip, dim_r)
    fc2t_d = fc2_d.T                                                 # (mip, dim_d)

    w7 = params["sa_conv7_w"].reshape(KSIZE, KSIZE).astype(jnp.float32)
    sa1 = params["sa_conv1_w"].reshape(()).astype(jnp.float32)
    wm = _tap_weight_maps(w7, H, W)                                  # (49, 1, HW)

    # Fold inference-mode BN scale and the scalar sa_conv weight into the 1x1 conv.
    inv = params["bn_gamma"] / jnp.sqrt(params["bn_var"] + BN_EPS)   # (dim_r,)
    wfold = params["conv1_w"].astype(jnp.float32) * inv[:, None] * sa1   # (dim_r, C)
    w1x1_r = wfold[:, :dim_r]
    w1x1_d = wfold[:, dim_r:]
    bias = (params["bn_beta"] - params["bn_mean"] * inv).reshape(dim_r, 1).astype(jnp.float32)

    # VMEM budget: double-buffered in/out blocks + resident weights + live temporaries,
    # capped at 48 MiB so it stays safe under v7x's 64 MiB per-TC VMEM.
    in_item = jnp.dtype(input_dtype).itemsize
    block_bytes = C * HW * in_item + dim_r * HW * 4
    weight_bytes = 4 * (KSIZE * KSIZE * HW + 4 * C * mip + dim_r * C + dim_r)
    temp_bytes = 4 * HW * (2 * C + dim_r + 16)     # f32 copies of r/d, products, sig/m/accs, y
    vmem_limit = int(min(48 * 1024 * 1024,
                         max(8 * 1024 * 1024,
                             2 * block_bytes + weight_bytes + temp_bytes + (2 << 20))))

    kernel = functools.partial(_mffm_kernel, H=H, W=W)

    out_flat = pl.pallas_call(
        kernel,
        out_shape=jax.ShapeDtypeStruct((N, dim_r, HW), jnp.float32),
        grid_spec=pltpu.PrefetchScalarGridSpec(
            num_scalar_prefetch=0,
            grid=(N,),
            in_specs=[
                pl.BlockSpec((1, dim_r, HW), lambda b: (b, 0, 0)),            # r
                pl.BlockSpec((1, dim_d, HW), lambda b: (b, 0, 0)),            # d
                pl.BlockSpec((dim_r, mip), lambda b: (0, 0)),                 # fc1^T (r part)
                pl.BlockSpec((dim_d, mip), lambda b: (0, 0)),                 # fc1^T (d part)
                pl.BlockSpec((dim_r, mip), lambda b: (0, 0)),                 # fc2   (r part)
                pl.BlockSpec((dim_d, mip), lambda b: (0, 0)),                 # fc2   (d part)
                pl.BlockSpec((mip, dim_r), lambda b: (0, 0)),                 # fc2^T (r part)
                pl.BlockSpec((mip, dim_d), lambda b: (0, 0)),                 # fc2^T (d part)
                pl.BlockSpec((KSIZE * KSIZE, 1, HW), lambda b: (0, 0, 0)),    # masked tap maps
                pl.BlockSpec((dim_r, dim_r), lambda b: (0, 0)),               # folded 1x1 (r)
                pl.BlockSpec((dim_r, dim_d), lambda b: (0, 0)),               # folded 1x1 (d)
                pl.BlockSpec((dim_r, 1), lambda b: (0, 0)),                   # folded BN shift
            ],
            out_specs=pl.BlockSpec((1, dim_r, HW), lambda b: (b, 0, 0)),
        ),
        compiler_params=pltpu.CompilerParams(
            dimension_semantics=("parallel",),
            vmem_limit_bytes=vmem_limit,
        ),
    )(r_flat, d_flat, fc1t_r, fc1t_d, fc2_r, fc2_d, fc2t_r, fc2t_d,
      wm, w1x1_r, w1x1_d, bias)

    return out_flat.reshape(N, dim_r, H, W)


def reference_mffm(r, d, params):
    """Pure-JAX reference matching the PyTorch MFFM forward (BN in eval mode)."""
    x = jnp.concatenate([r, d], axis=1)
    pooled = jnp.mean(x, axis=(2, 3))                                   # AdaptiveAvgPool2d(1)
    h1 = jnp.maximum(pooled @ params["fc1_w"].T, 0.0)                   # (N, mip)
    gate = jax.nn.sigmoid(h1 @ params["fc2_w"].T)                       # (N, C)
    out1 = x * gate[:, :, None, None]
    m = jnp.max(out1, axis=1, keepdims=True)                            # (N, 1, H, W)
    conv = lax.conv_general_dilated(
        m, params["sa_conv7_w"].reshape(1, 1, KSIZE, KSIZE),
        window_strides=(1, 1), padding=((PAD, PAD), (PAD, PAD)),
        dimension_numbers=("NCHW", "OIHW", "NCHW"))
    sa = params["sa_conv1_w"].reshape(()) * jax.nn.sigmoid(conv)
    out2 = out1 * sa
    y = jnp.einsum("kc,nchw->nkhw", params["conv1_w"], out2,
                   precision=lax.Precision.HIGHEST)
    inv = params["bn_gamma"] / jnp.sqrt(params["bn_var"] + BN_EPS)
    y = (y * inv[None, :, None, None]
         + (params["bn_beta"] - params["bn_mean"] * inv)[None, :, None, None])
    return jnp.maximum(y, 0.0)


if __name__ == "__main__":
    key = jax.random.PRNGKey(0)
    ks = jax.random.split(key, 11)

    # Small shapes consistent with MFFM(dim_r=16, dim_d=16): C = 32, mip = min(8, C//16) = 2.
    N, dim_r, dim_d, H, W = 2, 16, 16, 16, 16
    C = dim_r + dim_d
    mip = min(8, C // 16)

    r = jax.random.normal(ks[0], (N, dim_r, H, W), dtype=jnp.float32)
    d = jax.random.normal(ks[1], (N, dim_d, H, W), dtype=jnp.float32)

    def uni(k, shape, fan_in):
        b = 1.0 / (fan_in ** 0.5)
        return jax.random.uniform(k, shape, minval=-b, maxval=b, dtype=jnp.float32)

    params = {
        "fc1_w": uni(ks[2], (mip, C), C),                        # Conv2d(C, mip, 1, bias=False)
        "fc2_w": uni(ks[3], (C, mip), mip),                      # Conv2d(mip, C, 1, bias=False)
        "sa_conv7_w": uni(ks[4], (KSIZE, KSIZE), KSIZE * KSIZE), # Conv2d(1, 1, 7, pad=3, bias=False)
        "sa_conv1_w": uni(ks[5], (1,), 1),                       # Conv2d(1, 1, 1, bias=False)
        "conv1_w": uni(ks[6], (dim_r, C), C),                    # Conv2d(C, dim_r, 1, bias=False)
        "bn_gamma": jax.random.uniform(ks[7], (dim_r,), minval=0.5, maxval=1.5, dtype=jnp.float32),
        "bn_beta": jax.random.uniform(ks[8], (dim_r,), minval=-0.5, maxval=0.5, dtype=jnp.float32),
        "bn_mean": 0.1 * jax.random.normal(ks[9], (dim_r,), dtype=jnp.float32),
        "bn_var": jax.random.uniform(ks[10], (dim_r,), minval=0.5, maxval=1.5, dtype=jnp.float32),
    }

    # 1) Exact-semantics path: f32 activation transfer.
    out_f32 = jax.block_until_ready(mffm_forward(r, d, params, input_dtype=jnp.float32))
    ref_f32 = jax.block_until_ready(reference_mffm(r, d, params))
    assert out_f32.shape == (N, dim_r, H, W), out_f32.shape
    err32 = float(jnp.max(jnp.abs(out_f32 - ref_f32)))
    assert jnp.allclose(out_f32, ref_f32, atol=1e-4, rtol=1e-4), err32

    # 2) bf16 activation-transfer path (HBM traffic halved; in-kernel compute stays f32).
    #    Compare against the reference run on the same bf16-rounded inputs.
    out_bf16 = jax.block_until_ready(mffm_forward(r, d, params))       # default bf16 transfer
    r_q = r.astype(jnp.bfloat16).astype(jnp.float32)
    d_q = d.astype(jnp.bfloat16).astype(jnp.float32)
    ref_bf16 = jax.block_until_ready(reference_mffm(r_q, d_q, params))
    err16 = float(jnp.max(jnp.abs(out_bf16 - ref_bf16)))
    assert jnp.allclose(out_bf16, ref_bf16, atol=2e-4, rtol=2e-4), err16

    print("KERNEL_OK")
</pallas_src>

<mosaic_0001>
module attributes {stable_mosaic.version = 11 : i64} {
  func.func @_mffm_kernel(%arg0: i32, %arg1: memref<1x16x256xf32, #tpu.memory_space<vmem>>, %arg2: memref<1x16x256xf32, #tpu.memory_space<vmem>>, %arg3: memref<16x2xf32, #tpu.memory_space<vmem>>, %arg4: memref<16x2xf32, #tpu.memory_space<vmem>>, %arg5: memref<16x2xf32, #tpu.memory_space<vmem>>, %arg6: memref<16x2xf32, #tpu.memory_space<vmem>>, %arg7: memref<2x16xf32, #tpu.memory_space<vmem>>, %arg8: memref<2x16xf32, #tpu.memory_space<vmem>>, %arg9: memref<49x1x256xf32, #tpu.memory_space<vmem>>, %arg10: memref<16x16xf32, #tpu.memory_space<vmem>>, %arg11: memref<16x16xf32, #tpu.memory_space<vmem>>, %arg12: memref<16x1xf32, #tpu.memory_space<vmem>>, %arg13: memref<1x16x256xf32, #tpu.memory_space<vmem>>) attributes {dimension_semantics = [#tpu.dimension_semantics<parallel>], iteration_bounds = array<i64: 2>, scalar_prefetch = 0 : i64, scratch_operands = 0 : i64, tpu.core_type = #tpu.core_type<tc>, window_params = [{transform_indices = @transform_0, window_bounds = array<i64: 1, 16, 256>}, {transform_indices = @transform_1, window_bounds = array<i64: 1, 16, 256>}, {pipeline_mode = #tpu.pipeline_mode<synchronous>, transform_indices = @transform_2, window_bounds = array<i64: 16, 2>}, {pipeline_mode = #tpu.pipeline_mode<synchronous>, transform_indices = @transform_3, window_bounds = array<i64: 16, 2>}, {pipeline_mode = #tpu.pipeline_mode<synchronous>, transform_indices = @transform_4, window_bounds = array<i64: 16, 2>}, {pipeline_mode = #tpu.pipeline_mode<synchronous>, transform_indices = @transform_5, window_bounds = array<i64: 16, 2>}, {pipeline_mode = #tpu.pipeline_mode<synchronous>, transform_indices = @transform_6, window_bounds = array<i64: 2, 16>}, {pipeline_mode = #tpu.pipeline_mode<synchronous>, transform_indices = @transform_7, window_bounds = array<i64: 2, 16>}, {pipeline_mode = #tpu.pipeline_mode<synchronous>, transform_indices = @transform_8, window_bounds = array<i64: 49, 1, 256>}, {pipeline_mode = #tpu.pipeline_mode<synchronous>, transform_indices = @transform_9, window_bounds = array<i64: 16, 16>}, {pipeline_mode = #tpu.pipeline_mode<synchronous>, transform_indices = @transform_10, window_bounds = array<i64: 16, 16>}, {pipeline_mode = #tpu.pipeline_mode<synchronous>, transform_indices = @transform_11, window_bounds = array<i64: 16, 1>}, {transform_indices = @transform_12, window_bounds = array<i64: 1, 16, 256>}]} {
    %c0 = arith.constant 0 : index
    %c0_0 = arith.constant 0 : index
    %c0_1 = arith.constant 0 : index
    %0 = vector.load %arg1[%c0, %c0_0, %c0_1] : memref<1x16x256xf32, #tpu.memory_space<vmem>>, vector<1x16x256xf32>
    %1 = vector.shape_cast %0 : vector<1x16x256xf32> to vector<16x256xf32>
    %c0_2 = arith.constant 0 : index
    %c0_3 = arith.constant 0 : index
    %c0_4 = arith.constant 0 : index
    %2 = vector.load %arg2[%c0_2, %c0_3, %c0_4] : memref<1x16x256xf32, #tpu.memory_space<vmem>>, vector<1x16x256xf32>
    %3 = vector.shape_cast %2 : vector<1x16x256xf32> to vector<16x256xf32>
    %cst = arith.constant dense<0.000000e+00> : vector<16xf32>
    %4 = vector.multi_reduction <add>, %1, %cst [1] : vector<16x256xf32> to vector<16xf32>
    %5 = vector.shape_cast %4 : vector<16xf32> to vector<16x1xf32>
    %cst_5 = arith.constant 2.560000e+02 : f32
    %6 = vector.broadcast %cst_5 : f32 to vector<16x1xf32>
    %7 = arith.divf %5, %6 : vector<16x1xf32>
    %cst_6 = arith.constant dense<0.000000e+00> : vector<16xf32>
    %8 = vector.multi_reduction <add>, %3, %cst_6 [1] : vector<16x256xf32> to vector<16xf32>
    %9 = vector.shape_cast %8 : vector<16xf32> to vector<16x1xf32>
    %cst_7 = arith.constant 2.560000e+02 : f32
    %10 = vector.broadcast %cst_7 : f32 to vector<16x1xf32>
    %11 = arith.divf %9, %10 : vector<16x1xf32>
    %c0_8 = arith.constant 0 : index
    %c0_9 = arith.constant 0 : index
    %12 = vector.load %arg3[%c0_8, %c0_9] : memref<16x2xf32, #tpu.memory_space<vmem>>, vector<16x2xf32>
    %13 = vector.broadcast %7 : vector<16x1xf32> to vector<16x2xf32>
    %14 = arith.mulf %12, %13 : vector<16x2xf32>
    %cst_10 = arith.constant dense<0.000000e+00> : vector<2xf32>
    %15 = vector.multi_reduction <add>, %14, %cst_10 [0] : vector<16x2xf32> to vector<2xf32>
    %16 = vector.shape_cast %15 : vector<2xf32> to vector<1x2xf32>
    %c0_11 = arith.constant 0 : index
    %c0_12 = arith.constant 0 : index
    %17 = vector.load %arg4[%c0_11, %c0_12] : memref<16x2xf32, #tpu.memory_space<vmem>>, vector<16x2xf32>
    %18 = vector.broadcast %11 : vector<16x1xf32> to vector<16x2xf32>
    %19 = arith.mulf %17, %18 : vector<16x2xf32>
    %cst_13 = arith.constant dense<0.000000e+00> : vector<2xf32>
    %20 = vector.multi_reduction <add>, %19, %cst_13 [0] : vector<16x2xf32> to vector<2xf32>
    %21 = vector.shape_cast %20 : vector<2xf32> to vector<1x2xf32>
    %22 = arith.addf %16, %21 : vector<1x2xf32>
    %cst_14 = arith.constant 0.000000e+00 : f32
    %23 = vector.broadcast %cst_14 : f32 to vector<1x2xf32>
    %24 = arith.maximumf %22, %23 : vector<1x2xf32>
    %c0_15 = arith.constant 0 : index
    %c0_16 = arith.constant 0 : index
    %25 = vector.load %arg5[%c0_15, %c0_16] : memref<16x2xf32, #tpu.memory_space<vmem>>, vector<16x2xf32>
    %26 = vector.broadcast %24 : vector<1x2xf32> to vector<16x2xf32>
    %27 = arith.mulf %25, %26 : vector<16x2xf32>
    %cst_17 = arith.constant dense<0.000000e+00> : vector<16xf32>
    %28 = vector.multi_reduction <add>, %27, %cst_17 [1] : vector<16x2xf32> to vector<16xf32>
    %29 = vector.shape_cast %28 : vector<16xf32> to vector<16x1xf32>
    %30 = arith.negf %29 : vector<16x1xf32>
    %31 = math.exp %30 : vector<16x1xf32>
    %cst_18 = arith.constant 1.000000e+00 : f32
    %32 = vector.broadcast %cst_18 : f32 to vector<16x1xf32>
    %33 = arith.addf %32, %31 : vector<16x1xf32>
    %34 = arith.divf %32, %33 : vector<16x1xf32>
    %c0_19 = arith.constant 0 : index
    %c0_20 = arith.constant 0 : index
    %35 = vector.load %arg6[%c0_19, %c0_20] : memref<16x2xf32, #tpu.memory_space<vmem>>, vector<16x2xf32>
    %36 = vector.broadcast %24 : vector<1x2xf32> to vector<16x2xf32>
    %37 = arith.mulf %35, %36 : vector<16x2xf32>
    %cst_21 = arith.constant dense<0.000000e+00> : vector<16xf32>
    %38 = vector.multi_reduction <add>, %37, %cst_21 [1] : vector<16x2xf32> to vector<16xf32>
    %39 = vector.shape_cast %38 : vector<16xf32> to vector<16x1xf32>
    %40 = arith.negf %39 : vector<16x1xf32>
    %41 = math.exp %40 : vector<16x1xf32>
    %cst_22 = arith.constant 1.000000e+00 : f32
    %42 = vector.broadcast %cst_22 : f32 to vector<16x1xf32>
    %43 = arith.addf %42, %41 : vector<16x1xf32>
    %44 = arith.divf %42, %43 : vector<16x1xf32>
    %c0_23 = arith.constant 0 : index
    %c0_24 = arith.constant 0 : index
    %45 = vector.load %arg7[%c0_23, %c0_24] : memref<2x16xf32, #tpu.memory_space<vmem>>, vector<2x16xf32>
    %cst_25 = arith.constant dense<0.000000e+00> : vector<1x16xf32>
    %46 = tpu.matmul %24, %45, %cst_25 {dimension_numbers = #tpu.dot_dimension_numbers<[1], [0], [0], [1], [0, 0, 1, 1], [], []>} : vector<1x2xf32>, vector<2x16xf32>, vector<1x16xf32> -> vector<1x16xf32>
    %47 = arith.negf %46 : vector<1x16xf32>
    %48 = math.exp %47 : vector<1x16xf32>
    %cst_26 = arith.constant 1.000000e+00 : f32
    %49 = vector.broadcast %cst_26 : f32 to vector<1x16xf32>
    %50 = arith.addf %49, %48 : vector<1x16xf32>
    %51 = arith.divf %49, %50 : vector<1x16xf32>
    %c0_27 = arith.constant 0 : index
    %c0_28 = arith.constant 0 : index
    %52 = vector.load %arg8[%c0_27, %c0_28] : memref<2x16xf32, #tpu.memory_space<vmem>>, vector<2x16xf32>
    %cst_29 = arith.constant dense<0.000000e+00> : vector<1x16xf32>
    %53 = tpu.matmul %24, %52, %cst_29 {dimension_numbers = #tpu.dot_dimension_numbers<[1], [0], [0], [1], [0, 0, 1, 1], [], []>} : vector<1x2xf32>, vector<2x16xf32>, vector<1x16xf32> -> vector<1x16xf32>
    %54 = arith.negf %53 : vector<1x16xf32>
    %55 = math.exp %54 : vector<1x16xf32>
    %cst_30 = arith.constant 1.000000e+00 : f32
    %56 = vector.broadcast %cst_30 : f32 to vector<1x16xf32>
    %57 = arith.addf %56, %55 : vector<1x16xf32>
    %58 = arith.divf %56, %57 : vector<1x16xf32>
    %59 = vector.broadcast %34 : vector<16x1xf32> to vector<16x256xf32>
    %60 = arith.mulf %1, %59 : vector<16x256xf32>
    %cst_31 = arith.constant dense<0xFF800000> : vector<256xf32>
    %61 = vector.multi_reduction <maximumf>, %60, %cst_31 [0] : vector<16x256xf32> to vector<256xf32>
    %62 = vector.shape_cast %61 : vector<256xf32> to vector<1x256xf32>
    %63 = vector.broadcast %44 : vector<16x1xf32> to vector<16x256xf32>
    %64 = arith.mulf %3, %63 : vector<16x256xf32>
    %cst_32 = arith.constant dense<0xFF800000> : vector<256xf32>
    %65 = vector.multi_reduction <maximumf>, %64, %cst_32 [0] : vector<16x256xf32> to vector<256xf32>
    %66 = vector.shape_cast %65 : vector<256xf32> to vector<1x256xf32>
    %67 = arith.maximumf %62, %66 : vector<1x256xf32>
    %c51_i32 = arith.constant 51 : i32
    %68 = tpu.dynamic_rotate %67 by %c51_i32 dim 1 : vector<1x256xf32>, i32 -> vector<1x256xf32>
    %c0_33 = arith.constant 0 : index
    %c0_34 = arith.constant 0 : index
    %c0_35 = arith.constant 0 : index
    %69 = vector.load %arg9[%c0_33, %c0_34, %c0_35] : memref<49x1x256xf32, #tpu.memory_space<vmem>>, vector<1x1x256xf32>
    %70 = vector.shape_cast %69 : vector<1x1x256xf32> to vector<1x256xf32>
    %71 = arith.mulf %70, %68 : vector<1x256xf32>
    %c50_i32 = arith.constant 50 : i32
    %72 = tpu.dynamic_rotate %67 by %c50_i32 dim 1 : vector<1x256xf32>, i32 -> vector<1x256xf32>
    %c1 = arith.constant 1 : index
    %c0_36 = arith.constant 0 : index
    %c0_37 = arith.constant 0 : index
    %73 = vector.load %arg9[%c1, %c0_36, %c0_37] : memref<49x1x256xf32, #tpu.memory_space<vmem>>, vector<1x1x256xf32>
    %74 = vector.shape_cast %73 : vector<1x1x256xf32> to vector<1x256xf32>
    %75 = arith.mulf %74, %72 : vector<1x256xf32>
    %76 = arith.addf %71, %75 : vector<1x256xf32>
    %c49_i32 = arith.constant 49 : i32
    %77 = tpu.dynamic_rotate %67 by %c49_i32 dim 1 : vector<1x256xf32>, i32 -> vector<1x256xf32>
    %c2 = arith.constant 2 : index
    %c0_38 = arith.constant 0 : index
    %c0_39 = arith.constant 0 : index
    %78 = vector.load %arg9[%c2, %c0_38, %c0_39] : memref<49x1x256xf32, #tpu.memory_space<vmem>>, vector<1x1x256xf32>
    %79 = vector.shape_cast %78 : vector<1x1x256xf32> to vector<1x256xf32>
    %80 = arith.mulf %79, %77 : vector<1x256xf32>
    %81 = arith.addf %76, %80 : vector<1x256xf32>
    %c48_i32 = arith.constant 48 : i32
    %82 = tpu.dynamic_rotate %67 by %c48_i32 dim 1 : vector<1x256xf32>, i32 -> vector<1x256xf32>
    %c3 = arith.constant 3 : index
    %c0_40 = arith.constant 0 : index
    %c0_41 = arith.constant 0 : index
    %83 = vector.load %arg9[%c3, %c0_40, %c0_41] : memref<49x1x256xf32, #tpu.memory_space<vmem>>, vector<1x1x256xf32>
    %84 = vector.shape_cast %83 : vector<1x1x256xf32> to vector<1x256xf32>
    %85 = arith.mulf %84, %82 : vector<1x256xf32>
    %86 = arith.addf %81, %85 : vector<1x256xf32>
    %c47_i32 = arith.constant 47 : i32
    %87 = tpu.dynamic_rotate %67 by %c47_i32 dim 1 : vector<1x256xf32>, i32 -> vector<1x256xf32>
    %c4 = arith.constant 4 : index
    %c0_42 = arith.constant 0 : index
    %c0_43 = arith.constant 0 : index
    %88 = vector.load %arg9[%c4, %c0_42, %c0_43] : memref<49x1x256xf32, #tpu.memory_space<vmem>>, vector<1x1x256xf32>
    %89 = vector.shape_cast %88 : vector<1x1x256xf32> to vector<1x256xf32>
    %90 = arith.mulf %89, %87 : vector<1x256xf32>
    %91 = arith.addf %86, %90 : vector<1x256xf32>
    %c46_i32 = arith.constant 46 : i32
    %92 = tpu.dynamic_rotate %67 by %c46_i32 dim 1 : vector<1x256xf32>, i32 -> vector<1x256xf32>
    %c5 = arith.constant 5 : index
    %c0_44 = arith.constant 0 : index
    %c0_45 = arith.constant 0 : index
    %93 = vector.load %arg9[%c5, %c0_44, %c0_45] : memref<49x1x256xf32, #tpu.memory_space<vmem>>, vector<1x1x256xf32>
    %94 = vector.shape_cast %93 : vector<1x1x256xf32> to vector<1x256xf32>
    %95 = arith.mulf %94, %92 : vector<1x256xf32>
    %96 = arith.addf %91, %95 : vector<1x256xf32>
    %c45_i32 = arith.constant 45 : i32
    %97 = tpu.dynamic_rotate %67 by %c45_i32 dim 1 : vector<1x256xf32>, i32 -> vector<1x256xf32>
    %c6 = arith.constant 6 : index
    %c0_46 = arith.constant 0 : index
    %c0_47 = arith.constant 0 : index
    %98 = vector.load %arg9[%c6, %c0_46, %c0_47] : memref<49x1x256xf32, #tpu.memory_space<vmem>>, vector<1x1x256xf32>
    %99 = vector.shape_cast %98 : vector<1x1x256xf32> to vector<1x256xf32>
    %100 = arith.mulf %99, %97 : vector<1x256xf32>
    %101 = arith.addf %96, %100 : vector<1x256xf32>
    %c35_i32 = arith.constant 35 : i32
    %102 = tpu.dynamic_rotate %67 by %c35_i32 dim 1 : vector<1x256xf32>, i32 -> vector<1x256xf32>
    %c7 = arith.constant 7 : index
    %c0_48 = arith.constant 0 : index
    %c0_49 = arith.constant 0 : index
    %103 = vector.load %arg9[%c7, %c0_48, %c0_49] : memref<49x1x256xf32, #tpu.memory_space<vmem>>, vector<1x1x256xf32>
    %104 = vector.shape_cast %103 : vector<1x1x256xf32> to vector<1x256xf32>
    %105 = arith.mulf %104, %102 : vector<1x256xf32>
    %c34_i32 = arith.constant 34 : i32
    %106 = tpu.dynamic_rotate %67 by %c34_i32 dim 1 : vector<1x256xf32>, i32 -> vector<1x256xf32>
    %c8 = arith.constant 8 : index
    %c0_50 = arith.constant 0 : index
    %c0_51 = arith.constant 0 : index
    %107 = vector.load %arg9[%c8, %c0_50, %c0_51] : memref<49x1x256xf32, #tpu.memory_space<vmem>>, vector<1x1x256xf32>
    %108 = vector.shape_cast %107 : vector<1x1x256xf32> to vector<1x256xf32>
    %109 = arith.mulf %108, %106 : vector<1x256xf32>
    %110 = arith.addf %105, %109 : vector<1x256xf32>
    %c33_i32 = arith.constant 33 : i32
    %111 = tpu.dynamic_rotate %67 by %c33_i32 dim 1 : vector<1x256xf32>, i32 -> vector<1x256xf32>
    %c9 = arith.constant 9 : index
    %c0_52 = arith.constant 0 : index
    %c0_53 = arith.constant 0 : index
    %112 = vector.load %arg9[%c9, %c0_52, %c0_53] : memref<49x1x256xf32, #tpu.memory_space<vmem>>, vector<1x1x256xf32>
    %113 = vector.shape_cast %112 : vector<1x1x256xf32> to vector<1x256xf32>
    %114 = arith.mulf %113, %111 : vector<1x256xf32>
    %115 = arith.addf %110, %114 : vector<1x256xf32>
    %c32_i32 = arith.constant 32 : i32
    %116 = tpu.dynamic_rotate %67 by %c32_i32 dim 1 : vector<1x256xf32>, i32 -> vector<1x256xf32>
    %c10 = arith.constant 10 : index
    %c0_54 = arith.constant 0 : index
    %c0_55 = arith.constant 0 : index
    %117 = vector.load %arg9[%c10, %c0_54, %c0_55] : memref<49x1x256xf32, #tpu.memory_space<vmem>>, vector<1x1x256xf32>
    %118 = vector.shape_cast %117 : vector<1x1x256xf32> to vector<1x256xf32>
    %119 = arith.mulf %118, %116 : vector<1x256xf32>
    %120 = arith.addf %115, %119 : vector<1x256xf32>
    %c31_i32 = arith.constant 31 : i32
    %121 = tpu.dynamic_rotate %67 by %c31_i32 dim 1 : vector<1x256xf32>, i32 -> vector<1x256xf32>
    %c11 = arith.constant 11 : index
    %c0_56 = arith.constant 0 : index
    %c0_57 = arith.constant 0 : index
    %122 = vector.load %arg9[%c11, %c0_56, %c0_57] : memref<49x1x256xf32, #tpu.memory_space<vmem>>, vector<1x1x256xf32>
    %123 = vector.shape_cast %122 : vector<1x1x256xf32> to vector<1x256xf32>
    %124 = arith.mulf %123, %121 : vector<1x256xf32>
    %125 = arith.addf %120, %124 : vector<1x256xf32>
    %c30_i32 = arith.constant 30 : i32
    %126 = tpu.dynamic_rotate %67 by %c30_i32 dim 1 : vector<1x256xf32>, i32 -> vector<1x256xf32>
    %c12 = arith.constant 12 : index
    %c0_58 = arith.constant 0 : index
    %c0_59 = arith.constant 0 : index
    %127 = vector.load %arg9[%c12, %c0_58, %c0_59] : memref<49x1x256xf32, #tpu.memory_space<vmem>>, vector<1x1x256xf32>
    %128 = vector.shape_cast %127 : vector<1x1x256xf32> to vector<1x256xf32>
    %129 = arith.mulf %128, %126 : vector<1x256xf32>
    %130 = arith.addf %125, %129 : vector<1x256xf32>
    %c29_i32 = arith.constant 29 : i32
    %131 = tpu.dynamic_rotate %67 by %c29_i32 dim 1 : vector<1x256xf32>, i32 -> vector<1x256xf32>
    %c13 = arith.constant 13 : index
    %c0_60 = arith.constant 0 : index
    %c0_61 = arith.constant 0 : index
    %132 = vector.load %arg9[%c13, %c0_60, %c0_61] : memref<49x1x256xf32, #tpu.memory_space<vmem>>, vector<1x1x256xf32>
    %133 = vector.shape_cast %132 : vector<1x1x256xf32> to vector<1x256xf32>
    %134 = arith.mulf %133, %131 : vector<1x256xf32>
    %135 = arith.addf %130, %134 : vector<1x256xf32>
    %c19_i32 = arith.constant 19 : i32
    %136 = tpu.dynamic_rotate %67 by %c19_i32 dim 1 : vector<1x256xf32>, i32 -> vector<1x256xf32>
    %c14 = arith.constant 14 : index
    %c0_62 = arith.constant 0 : index
    %c0_63 = arith.constant 0 : index
    %137 = vector.load %arg9[%c14, %c0_62, %c0_63] : memref<49x1x256xf32, #tpu.memory_space<vmem>>, vector<1x1x256xf32>
    %138 = vector.shape_cast %137 : vector<1x1x256xf32> to vector<1x256xf32>
    %139 = arith.mulf %138, %136 : vector<1x256xf32>
    %c18_i32 = arith.constant 18 : i32
    %140 = tpu.dynamic_rotate %67 by %c18_i32 dim 1 : vector<1x256xf32>, i32 -> vector<1x256xf32>
    %c15 = arith.constant 15 : index
    %c0_64 = arith.constant 0 : index
    %c0_65 = arith.constant 0 : index
    %141 = vector.load %arg9[%c15, %c0_64, %c0_65] : memref<49x1x256xf32, #tpu.memory_space<vmem>>, vector<1x1x256xf32>
    %142 = vector.shape_cast %141 : vector<1x1x256xf32> to vector<1x256xf32>
    %143 = arith.mulf %142, %140 : vector<1x256xf32>
    %144 = arith.addf %139, %143 : vector<1x256xf32>
    %c17_i32 = arith.constant 17 : i32
    %145 = tpu.dynamic_rotate %67 by %c17_i32 dim 1 : vector<1x256xf32>, i32 -> vector<1x256xf32>
    %c16 = arith.constant 16 : index
    %c0_66 = arith.constant 0 : index
    %c0_67 = arith.constant 0 : index
    %146 = vector.load %arg9[%c16, %c0_66, %c0_67] : memref<49x1x256xf32, #tpu.memory_space<vmem>>, vector<1x1x256xf32>
    %147 = vector.shape_cast %146 : vector<1x1x256xf32> to vector<1x256xf32>
    %148 = arith.mulf %147, %145 : vector<1x256xf32>
    %149 = arith.addf %144, %148 : vector<1x256xf32>
    %c16_i32 = arith.constant 16 : i32
    %150 = tpu.dynamic_rotate %67 by %c16_i32 dim 1 : vector<1x256xf32>, i32 -> vector<1x256xf32>
    %c17 = arith.constant 17 : index
    %c0_68 = arith.constant 0 : index
    %c0_69 = arith.constant 0 : index
    %151 = vector.load %arg9[%c17, %c0_68, %c0_69] : memref<49x1x256xf32, #tpu.memory_space<vmem>>, vector<1x1x256xf32>
    %152 = vector.shape_cast %151 : vector<1x1x256xf32> to vector<1x256xf32>
    %153 = arith.mulf %152, %150 : vector<1x256xf32>
    %154 = arith.addf %149, %153 : vector<1x256xf32>
    %c15_i32 = arith.constant 15 : i32
    %155 = tpu.dynamic_rotate %67 by %c15_i32 dim 1 : vector<1x256xf32>, i32 -> vector<1x256xf32>
    %c18 = arith.constant 18 : index
    %c0_70 = arith.constant 0 : index
    %c0_71 = arith.constant 0 : index
    %156 = vector.load %arg9[%c18, %c0_70, %c0_71] : memref<49x1x256xf32, #tpu.memory_space<vmem>>, vector<1x1x256xf32>
    %157 = vector.shape_cast %156 : vector<1x1x256xf32> to vector<1x256xf32>
    %158 = arith.mulf %157, %155 : vector<1x256xf32>
    %159 = arith.addf %154, %158 : vector<1x256xf32>
    %c14_i32 = arith.constant 14 : i32
    %160 = tpu.dynamic_rotate %67 by %c14_i32 dim 1 : vector<1x256xf32>, i32 -> vector<1x256xf32>
    %c19 = arith.constant 19 : index
    %c0_72 = arith.constant 0 : index
    %c0_73 = arith.constant 0 : index
    %161 = vector.load %arg9[%c19, %c0_72, %c0_73] : memref<49x1x256xf32, #tpu.memory_space<vmem>>, vector<1x1x256xf32>
    %162 = vector.shape_cast %161 : vector<1x1x256xf32> to vector<1x256xf32>
    %163 = arith.mulf %162, %160 : vector<1x256xf32>
    %164 = arith.addf %159, %163 : vector<1x256xf32>
    %c13_i32 = arith.constant 13 : i32
    %165 = tpu.dynamic_rotate %67 by %c13_i32 dim 1 : vector<1x256xf32>, i32 -> vector<1x256xf32>
    %c20 = arith.constant 20 : index
    %c0_74 = arith.constant 0 : index
    %c0_75 = arith.constant 0 : index
    %166 = vector.load %arg9[%c20, %c0_74, %c0_75] : memref<49x1x256xf32, #tpu.memory_space<vmem>>, vector<1x1x256xf32>
    %167 = vector.shape_cast %166 : vector<1x1x256xf32> to vector<1x256xf32>
    %168 = arith.mulf %167, %165 : vector<1x256xf32>
    %169 = arith.addf %164, %168 : vector<1x256xf32>
    %c3_i32 = arith.constant 3 : i32
    %170 = tpu.dynamic_rotate %67 by %c3_i32 dim 1 : vector<1x256xf32>, i32 -> vector<1x256xf32>
    %c21 = arith.constant 21 : index
    %c0_76 = arith.constant 0 : index
    %c0_77 = arith.constant 0 : index
    %171 = vector.load %arg9[%c21, %c0_76, %c0_77] : memref<49x1x256xf32, #tpu.memory_space<vmem>>, vector<1x1x256xf32>
    %172 = vector.shape_cast %171 : vector<1x1x256xf32> to vector<1x256xf32>
    %173 = arith.mulf %172, %170 : vector<1x256xf32>
    %c2_i32 = arith.constant 2 : i32
    %174 = tpu.dynamic_rotate %67 by %c2_i32 dim 1 : vector<1x256xf32>, i32 -> vector<1x256xf32>
    %c22 = arith.constant 22 : index
    %c0_78 = arith.constant 0 : index
    %c0_79 = arith.constant 0 : index
    %175 = vector.load %arg9[%c22, %c0_78, %c0_79] : memref<49x1x256xf32, #tpu.memory_space<vmem>>, vector<1x1x256xf32>
    %176 = vector.shape_cast %175 : vector<1x1x256xf32> to vector<1x256xf32>
    %177 = arith.mulf %176, %174 : vector<1x256xf32>
    %178 = arith.addf %173, %177 : vector<1x256xf32>
    %c1_i32 = arith.constant 1 : i32
    %179 = tpu.dynamic_rotate %67 by %c1_i32 dim 1 : vector<1x256xf32>, i32 -> vector<1x256xf32>
    %c23 = arith.constant 23 : index
    %c0_80 = arith.constant 0 : index
    %c0_81 = arith.constant 0 : index
    %180 = vector.load %arg9[%c23, %c0_80, %c0_81] : memref<49x1x256xf32, #tpu.memory_space<vmem>>, vector<1x1x256xf32>
    %181 = vector.shape_cast %180 : vector<1x1x256xf32> to vector<1x256xf32>
    %182 = arith.mulf %181, %179 : vector<1x256xf32>
    %183 = arith.addf %178, %182 : vector<1x256xf32>
    %c24 = arith.constant 24 : index
    %c0_82 = arith.constant 0 : index
    %c0_83 = arith.constant 0 : index
    %184 = vector.load %arg9[%c24, %c0_82, %c0_83] : memref<49x1x256xf32, #tpu.memory_space<vmem>>, vector<1x1x256xf32>
    %185 = vector.shape_cast %184 : vector<1x1x256xf32> to vector<1x256xf32>
    %186 = arith.mulf %185, %67 : vector<1x256xf32>
    %187 = arith.addf %183, %186 : vector<1x256xf32>
    %c255_i32 = arith.constant 255 : i32
    %188 = tpu.dynamic_rotate %67 by %c255_i32 dim 1 : vector<1x256xf32>, i32 -> vector<1x256xf32>
    %c25 = arith.constant 25 : index
    %c0_84 = arith.constant 0 : index
    %c0_85 = arith.constant 0 : index
    %189 = vector.load %arg9[%c25, %c0_84, %c0_85] : memref<49x1x256xf32, #tpu.memory_space<vmem>>, vector<1x1x256xf32>
    %190 = vector.shape_cast %189 : vector<1x1x256xf32> to vector<1x256xf32>
    %191 = arith.mulf %190, %188 : vector<1x256xf32>
    %192 = arith.addf %187, %191 : vector<1x256xf32>
    %c254_i32 = arith.constant 254 : i32
    %193 = tpu.dynamic_rotate %67 by %c254_i32 dim 1 : vector<1x256xf32>, i32 -> vector<1x256xf32>
    %c26 = arith.constant 26 : index
    %c0_86 = arith.constant 0 : index
    %c0_87 = arith.constant 0 : index
    %194 = vector.load %arg9[%c26, %c0_86, %c0_87] : memref<49x1x256xf32, #tpu.memory_space<vmem>>, vector<1x1x256xf32>
    %195 = vector.shape_cast %194 : vector<1x1x256xf32> to vector<1x256xf32>
    %196 = arith.mulf %195, %193 : vector<1x256xf32>
    %197 = arith.addf %192, %196 : vector<1x256xf32>
    %c253_i32 = arith.constant 253 : i32
    %198 = tpu.dynamic_rotate %67 by %c253_i32 dim 1 : vector<1x256xf32>, i32 -> vector<1x256xf32>
    %c27 = arith.constant 27 : index
    %c0_88 = arith.constant 0 : index
    %c0_89 = arith.constant 0 : index
    %199 = vector.load %arg9[%c27, %c0_88, %c0_89] : memref<49x1x256xf32, #tpu.memory_space<vmem>>, vector<1x1x256xf32>
    %200 = vector.shape_cast %199 : vector<1x1x256xf32> to vector<1x256xf32>
    %201 = arith.mulf %200, %198 : vector<1x256xf32>
    %202 = arith.addf %197, %201 : vector<1x256xf32>
    %c243_i32 = arith.constant 243 : i32
    %203 = tpu.dynamic_rotate %67 by %c243_i32 dim 1 : vector<1x256xf32>, i32 -> vector<1x256xf32>
    %c28 = arith.constant 28 : index
    %c0_90 = arith.constant 0 : index
    %c0_91 = arith.constant 0 : index
    %204 = vector.load %arg9[%c28, %c0_90, %c0_91] : memref<49x1x256xf32, #tpu.memory_space<vmem>>, vector<1x1x256xf32>
    %205 = vector.shape_cast %204 : vector<1x1x256xf32> to vector<1x256xf32>
    %206 = arith.mulf %205, %203 : vector<1x256xf32>
    %c242_i32 = arith.constant 242 : i32
    %207 = tpu.dynamic_rotate %67 by %c242_i32 dim 1 : vector<1x256xf32>, i32 -> vector<1x256xf32>
    %c29 = arith.constant 29 : index
    %c0_92 = arith.constant 0 : index
    %c0_93 = arith.constant 0 : index
    %208 = vector.load %arg9[%c29, %c0_92, %c0_93] : memref<49x1x256xf32, #tpu.memory_space<vmem>>, vector<1x1x256xf32>
    %209 = vector.shape_cast %208 : vector<1x1x256xf32> to vector<1x256xf32>
    %210 = arith.mulf %209, %207 : vector<1x256xf32>
    %211 = arith.addf %206, %210 : vector<1x256xf32>
    %c241_i32 = arith.constant 241 : i32
    %212 = tpu.dynamic_rotate %67 by %c241_i32 dim 1 : vector<1x256xf32>, i32 -> vector<1x256xf32>
    %c30 = arith.constant 30 : index
    %c0_94 = arith.constant 0 : index
    %c0_95 = arith.constant 0 : index
    %213 = vector.load %arg9[%c30, %c0_94, %c0_95] : memref<49x1x256xf32, #tpu.memory_space<vmem>>, vector<1x1x256xf32>
    %214 = vector.shape_cast %213 : vector<1x1x256xf32> to vector<1x256xf32>
    %215 = arith.mulf %214, %212 : vector<1x256xf32>
    %216 = arith.addf %211, %215 : vector<1x256xf32>
    %c240_i32 = arith.constant 240 : i32
    %217 = tpu.dynamic_rotate %67 by %c240_i32 dim 1 : vector<1x256xf32>, i32 -> vector<1x256xf32>
    %c31 = arith.constant 31 : index
    %c0_96 = arith.constant 0 : index
    %c0_97 = arith.constant 0 : index
    %218 = vector.load %arg9[%c31, %c0_96, %c0_97] : memref<49x1x256xf32, #tpu.memory_space<vmem>>, vector<1x1x256xf32>
    %219 = vector.shape_cast %218 : vector<1x1x256xf32> to vector<1x256xf32>
    %220 = arith.mulf %219, %217 : vector<1x256xf32>
    %221 = arith.addf %216, %220 : vector<1x256xf32>
    %c239_i32 = arith.constant 239 : i32
    %222 = tpu.dynamic_rotate %67 by %c239_i32 dim 1 : vector<1x256xf32>, i32 -> vector<1x256xf32>
    %c32 = arith.constant 32 : index
    %c0_98 = arith.constant 0 : index
    %c0_99 = arith.constant 0 : index
    %223 = vector.load %arg9[%c32, %c0_98, %c0_99] : memref<49x1x256xf32, #tpu.memory_space<vmem>>, vector<1x1x256xf32>
    %224 = vector.shape_cast %223 : vector<1x1x256xf32> to vector<1x256xf32>
    %225 = arith.mulf %224, %222 : vector<1x256xf32>
    %226 = arith.addf %221, %225 : vector<1x256xf32>
    %c238_i32 = arith.constant 238 : i32
    %227 = tpu.dynamic_rotate %67 by %c238_i32 dim 1 : vector<1x256xf32>, i32 -> vector<1x256xf32>
    %c33 = arith.constant 33 : index
    %c0_100 = arith.constant 0 : index
    %c0_101 = arith.constant 0 : index
    %228 = vector.load %arg9[%c33, %c0_100, %c0_101] : memref<49x1x256xf32, #tpu.memory_space<vmem>>, vector<1x1x256xf32>
    %229 = vector.shape_cast %228 : vector<1x1x256xf32> to vector<1x256xf32>
    %230 = arith.mulf %229, %227 : vector<1x256xf32>
    %231 = arith.addf %226, %230 : vector<1x256xf32>
    %c237_i32 = arith.constant 237 : i32
    %232 = tpu.dynamic_rotate %67 by %c237_i32 dim 1 : vector<1x256xf32>, i32 -> vector<1x256xf32>
    %c34 = arith.constant 34 : index
    %c0_102 = arith.constant 0 : index
    %c0_103 = arith.constant 0 : index
    %233 = vector.load %arg9[%c34, %c0_102, %c0_103] : memref<49x1x256xf32, #tpu.memory_space<vmem>>, vector<1x1x256xf32>
    %234 = vector.shape_cast %233 : vector<1x1x256xf32> to vector<1x256xf32>
    %235 = arith.mulf %234, %232 : vector<1x256xf32>
    %236 = arith.addf %231, %235 : vector<1x256xf32>
    %c227_i32 = arith.constant 227 : i32
    %237 = tpu.dynamic_rotate %67 by %c227_i32 dim 1 : vector<1x256xf32>, i32 -> vector<1x256xf32>
    %c35 = arith.constant 35 : index
    %c0_104 = arith.constant 0 : index
    %c0_105 = arith.constant 0 : index
    %238 = vector.load %arg9[%c35, %c0_104, %c0_105] : memref<49x1x256xf32, #tpu.memory_space<vmem>>, vector<1x1x256xf32>
    %239 = vector.shape_cast %238 : vector<1x1x256xf32> to vector<1x256xf32>
    %240 = arith.mulf %239, %237 : vector<1x256xf32>
    %c226_i32 = arith.constant 226 : i32
    %241 = tpu.dynamic_rotate %67 by %c226_i32 dim 1 : vector<1x256xf32>, i32 -> vector<1x256xf32>
    %c36 = arith.constant 36 : index
    %c0_106 = arith.constant 0 : index
    %c0_107 = arith.constant 0 : index
    %242 = vector.load %arg9[%c36, %c0_106, %c0_107] : memref<49x1x256xf32, #tpu.memory_space<vmem>>, vector<1x1x256xf32>
    %243 = vector.shape_cast %242 : vector<1x1x256xf32> to vector<1x256xf32>
    %244 = arith.mulf %243, %241 : vector<1x256xf32>
    %245 = arith.addf %240, %244 : vector<1x256xf32>
    %c225_i32 = arith.constant 225 : i32
    %246 = tpu.dynamic_rotate %67 by %c225_i32 dim 1 : vector<1x256xf32>, i32 -> vector<1x256xf32>
    %c37 = arith.constant 37 : index
    %c0_108 = arith.constant 0 : index
    %c0_109 = arith.constant 0 : index
    %247 = vector.load %arg9[%c37, %c0_108, %c0_109] : memref<49x1x256xf32, #tpu.memory_space<vmem>>, vector<1x1x256xf32>
    %248 = vector.shape_cast %247 : vector<1x1x256xf32> to vector<1x256xf32>
    %249 = arith.mulf %248, %246 : vector<1x256xf32>
    %250 = arith.addf %245, %249 : vector<1x256xf32>
    %c224_i32 = arith.constant 224 : i32
    %251 = tpu.dynamic_rotate %67 by %c224_i32 dim 1 : vector<1x256xf32>, i32 -> vector<1x256xf32>
    %c38 = arith.constant 38 : index
    %c0_110 = arith.constant 0 : index
    %c0_111 = arith.constant 0 : index
    %252 = vector.load %arg9[%c38, %c0_110, %c0_111] : memref<49x1x256xf32, #tpu.memory_space<vmem>>, vector<1x1x256xf32>
    %253 = vector.shape_cast %252 : vector<1x1x256xf32> to vector<1x256xf32>
    %254 = arith.mulf %253, %251 : vector<1x256xf32>
    %255 = arith.addf %250, %254 : vector<1x256xf32>
    %c223_i32 = arith.constant 223 : i32
    %256 = tpu.dynamic_rotate %67 by %c223_i32 dim 1 : vector<1x256xf32>, i32 -> vector<1x256xf32>
    %c39 = arith.constant 39 : index
    %c0_112 = arith.constant 0 : index
    %c0_113 = arith.constant 0 : index
    %257 = vector.load %arg9[%c39, %c0_112, %c0_113] : memref<49x1x256xf32, #tpu.memory_space<vmem>>, vector<1x1x256xf32>
    %258 = vector.shape_cast %257 : vector<1x1x256xf32> to vector<1x256xf32>
    %259 = arith.mulf %258, %256 : vector<1x256xf32>
    %260 = arith.addf %255, %259 : vector<1x256xf32>
    %c222_i32 = arith.constant 222 : i32
    %261 = tpu.dynamic_rotate %67 by %c222_i32 dim 1 : vector<1x256xf32>, i32 -> vector<1x256xf32>
    %c40 = arith.constant 40 : index
    %c0_114 = arith.constant 0 : index
    %c0_115 = arith.constant 0 : index
    %262 = vector.load %arg9[%c40, %c0_114, %c0_115] : memref<49x1x256xf32, #tpu.memory_space<vmem>>, vector<1x1x256xf32>
    %263 = vector.shape_cast %262 : vector<1x1x256xf32> to vector<1x256xf32>
    %264 = arith.mulf %263, %261 : vector<1x256xf32>
    %265 = arith.addf %260, %264 : vector<1x256xf32>
    %c221_i32 = arith.constant 221 : i32
    %266 = tpu.dynamic_rotate %67 by %c221_i32 dim 1 : vector<1x256xf32>, i32 -> vector<1x256xf32>
    %c41 = arith.constant 41 : index
    %c0_116 = arith.constant 0 : index
    %c0_117 = arith.constant 0 : index
    %267 = vector.load %arg9[%c41, %c0_116, %c0_117] : memref<49x1x256xf32, #tpu.memory_space<vmem>>, vector<1x1x256xf32>
    %268 = vector.shape_cast %267 : vector<1x1x256xf32> to vector<1x256xf32>
    %269 = arith.mulf %268, %266 : vector<1x256xf32>
    %270 = arith.addf %265, %269 : vector<1x256xf32>
    %c211_i32 = arith.constant 211 : i32
    %271 = tpu.dynamic_rotate %67 by %c211_i32 dim 1 : vector<1x256xf32>, i32 -> vector<1x256xf32>
    %c42 = arith.constant 42 : index
    %c0_118 = arith.constant 0 : index
    %c0_119 = arith.constant 0 : index
    %272 = vector.load %arg9[%c42, %c0_118, %c0_119] : memref<49x1x256xf32, #tpu.memory_space<vmem>>, vector<1x1x256xf32>
    %273 = vector.shape_cast %272 : vector<1x1x256xf32> to vector<1x256xf32>
    %274 = arith.mulf %273, %271 : vector<1x256xf32>
    %c210_i32 = arith.constant 210 : i32
    %275 = tpu.dynamic_rotate %67 by %c210_i32 dim 1 : vector<1x256xf32>, i32 -> vector<1x256xf32>
    %c43 = arith.constant 43 : index
    %c0_120 = arith.constant 0 : index
    %c0_121 = arith.constant 0 : index
    %276 = vector.load %arg9[%c43, %c0_120, %c0_121] : memref<49x1x256xf32, #tpu.memory_space<vmem>>, vector<1x1x256xf32>
    %277 = vector.shape_cast %276 : vector<1x1x256xf32> to vector<1x256xf32>
    %278 = arith.mulf %277, %275 : vector<1x256xf32>
    %279 = arith.addf %274, %278 : vector<1x256xf32>
    %c209_i32 = arith.constant 209 : i32
    %280 = tpu.dynamic_rotate %67 by %c209_i32 dim 1 : vector<1x256xf32>, i32 -> vector<1x256xf32>
    %c44 = arith.constant 44 : index
    %c0_122 = arith.constant 0 : index
    %c0_123 = arith.constant 0 : index
    %281 = vector.load %arg9[%c44, %c0_122, %c0_123] : memref<49x1x256xf32, #tpu.memory_space<vmem>>, vector<1x1x256xf32>
    %282 = vector.shape_cast %281 : vector<1x1x256xf32> to vector<1x256xf32>
    %283 = arith.mulf %282, %280 : vector<1x256xf32>
    %284 = arith.addf %279, %283 : vector<1x256xf32>
    %c208_i32 = arith.constant 208 : i32
    %285 = tpu.dynamic_rotate %67 by %c208_i32 dim 1 : vector<1x256xf32>, i32 -> vector<1x256xf32>
    %c45 = arith.constant 45 : index
    %c0_124 = arith.constant 0 : index
    %c0_125 = arith.constant 0 : index
    %286 = vector.load %arg9[%c45, %c0_124, %c0_125] : memref<49x1x256xf32, #tpu.memory_space<vmem>>, vector<1x1x256xf32>
    %287 = vector.shape_cast %286 : vector<1x1x256xf32> to vector<1x256xf32>
    %288 = arith.mulf %287, %285 : vector<1x256xf32>
    %289 = arith.addf %284, %288 : vector<1x256xf32>
    %c207_i32 = arith.constant 207 : i32
    %290 = tpu.dynamic_rotate %67 by %c207_i32 dim 1 : vector<1x256xf32>, i32 -> vector<1x256xf32>
    %c46 = arith.constant 46 : index
    %c0_126 = arith.constant 0 : index
    %c0_127 = arith.constant 0 : index
    %291 = vector.load %arg9[%c46, %c0_126, %c0_127] : memref<49x1x256xf32, #tpu.memory_space<vmem>>, vector<1x1x256xf32>
    %292 = vector.shape_cast %291 : vector<1x1x256xf32> to vector<1x256xf32>
    %293 = arith.mulf %292, %290 : vector<1x256xf32>
    %294 = arith.addf %289, %293 : vector<1x256xf32>
    %c206_i32 = arith.constant 206 : i32
    %295 = tpu.dynamic_rotate %67 by %c206_i32 dim 1 : vector<1x256xf32>, i32 -> vector<1x256xf32>
    %c47 = arith.constant 47 : index
    %c0_128 = arith.constant 0 : index
    %c0_129 = arith.constant 0 : index
    %296 = vector.load %arg9[%c47, %c0_128, %c0_129] : memref<49x1x256xf32, #tpu.memory_space<vmem>>, vector<1x1x256xf32>
    %297 = vector.shape_cast %296 : vector<1x1x256xf32> to vector<1x256xf32>
    %298 = arith.mulf %297, %295 : vector<1x256xf32>
    %299 = arith.addf %294, %298 : vector<1x256xf32>
    %c205_i32 = arith.constant 205 : i32
    %300 = tpu.dynamic_rotate %67 by %c205_i32 dim 1 : vector<1x256xf32>, i32 -> vector<1x256xf32>
    %c48 = arith.constant 48 : index
    %c0_130 = arith.constant 0 : index
    %c0_131 = arith.constant 0 : index
    %301 = vector.load %arg9[%c48, %c0_130, %c0_131] : memref<49x1x256xf32, #tpu.memory_space<vmem>>, vector<1x1x256xf32>
    %302 = vector.shape_cast %301 : vector<1x1x256xf32> to vector<1x256xf32>
    %303 = arith.mulf %302, %300 : vector<1x256xf32>
    %304 = arith.addf %299, %303 : vector<1x256xf32>
    %305 = arith.addf %101, %135 : vector<1x256xf32>
    %306 = arith.addf %169, %202 : vector<1x256xf32>
    %307 = arith.addf %236, %270 : vector<1x256xf32>
    %308 = arith.addf %305, %306 : vector<1x256xf32>
    %309 = arith.addf %307, %304 : vector<1x256xf32>
    %310 = arith.addf %308, %309 : vector<1x256xf32>
    %311 = arith.negf %310 : vector<1x256xf32>
    %312 = math.exp %311 : vector<1x256xf32>
    %cst_132 = arith.constant 1.000000e+00 : f32
    %313 = vector.broadcast %cst_132 : f32 to vector<1x256xf32>
    %314 = arith.addf %313, %312 : vector<1x256xf32>
    %315 = arith.divf %313, %314 : vector<1x256xf32>
    %c0_133 = arith.constant 0 : index
    %c0_134 = arith.constant 0 : index
    %316 = vector.load %arg10[%c0_133, %c0_134] : memref<16x16xf32, #tpu.memory_space<vmem>>, vector<16x16xf32>
    %317 = vector.broadcast %51 : vector<1x16xf32> to vector<16x16xf32>
    %318 = arith.mulf %316, %317 : vector<16x16xf32>
    %c0_135 = arith.constant 0 : index
    %c0_136 = arith.constant 0 : index
    %319 = vector.load %arg11[%c0_135, %c0_136] : memref<16x16xf32, #tpu.memory_space<vmem>>, vector<16x16xf32>
    %320 = vector.broadcast %58 : vector<1x16xf32> to vector<16x16xf32>
    %321 = arith.mulf %319, %320 : vector<16x16xf32>
    %322 = vector.broadcast %315 : vector<1x256xf32> to vector<16x256xf32>
    %323 = arith.mulf %1, %322 : vector<16x256xf32>
    %cst_137 = arith.constant dense<0.000000e+00> : vector<16x256xf32>
    %324 = tpu.matmul %318, %323, %cst_137 {dimension_numbers = #tpu.dot_dimension_numbers<[1], [0], [0], [1], [0, 0, 1, 1], [], []>} : vector<16x16xf32>, vector<16x256xf32>, vector<16x256xf32> -> vector<16x256xf32>
    %325 = vector.broadcast %315 : vector<1x256xf32> to vector<16x256xf32>
    %326 = arith.mulf %3, %325 : vector<16x256xf32>
    %cst_138 = arith.constant dense<0.000000e+00> : vector<16x256xf32>
    %327 = tpu.matmul %321, %326, %cst_138 {dimension_numbers = #tpu.dot_dimension_numbers<[1], [0], [0], [1], [0, 0, 1, 1], [], []>} : vector<16x16xf32>, vector<16x256xf32>, vector<16x256xf32> -> vector<16x256xf32>
    %328 = arith.addf %324, %327 : vector<16x256xf32>
    %c0_139 = arith.constant 0 : index
    %c0_140 = arith.constant 0 : index
    %329 = vector.load %arg12[%c0_139, %c0_140] : memref<16x1xf32, #tpu.memory_space<vmem>>, vector<16x1xf32>
    %330 = vector.broadcast %329 : vector<16x1xf32> to vector<16x256xf32>
    %331 = arith.addf %328, %330 : vector<16x256xf32>
    %cst_141 = arith.constant 0.000000e+00 : f32
    %332 = vector.broadcast %cst_141 : f32 to vector<16x256xf32>
    %333 = arith.maximumf %331, %332 : vector<16x256xf32>
    %c0_142 = arith.constant 0 : index
    %c0_143 = arith.constant 0 : index
    %c0_144 = arith.constant 0 : index
    %334 = vector.load %arg13[%c0_142, %c0_143, %c0_144] : memref<1x16x256xf32, #tpu.memory_space<vmem>>, vector<1x16x256xf32>
    %335 = vector.shape_cast %334 : vector<1x16x256xf32> to vector<16x256xf32>
    %336 = vector.shape_cast %333 : vector<16x256xf32> to vector<1x16x256xf32>
    tpu.vector_store %arg13[%c0_142, %c0_143, %c0_144], %336 {strides = array<i32>} : memref<1x16x256xf32, #tpu.memory_space<vmem>>, vector<1x16x256xf32>,
    return
  }
  func.func @transform_0(%arg0: i32) -> (i32, i32, i32) {
    %c0_i32 = arith.constant 0 : i32
    %c0_i32_0 = arith.constant 0 : i32
    %c0_i32_1 = arith.constant 0 : i32
    return %arg0, %c0_i32, %c0_i32_0 : i32, i32, i32
  }
  func.func @transform_1(%arg0: i32) -> (i32, i32, i32) {
    %c0_i32 = arith.constant 0 : i32
    %c0_i32_0 = arith.constant 0 : i32
    %c0_i32_1 = arith.constant 0 : i32
    return %arg0, %c0_i32, %c0_i32_0 : i32, i32, i32
  }
  func.func @transform_2(%arg0: i32) -> (i32, i32) {
    %c0_i32 = arith.constant 0 : i32
    %c0_i32_0 = arith.constant 0 : i32
    %c0_i32_1 = arith.constant 0 : i32
    return %c0_i32, %c0_i32_0 : i32, i32
  }
  func.func @transform_3(%arg0: i32) -> (i32, i32) {
    %c0_i32 = arith.constant 0 : i32
    %c0_i32_0 = arith.constant 0 : i32
    %c0_i32_1 = arith.constant 0 : i32
    return %c0_i32, %c0_i32_0 : i32, i32
  }
  func.func @transform_4(%arg0: i32) -> (i32, i32) {
    %c0_i32 = arith.constant 0 : i32
    %c0_i32_0 = arith.constant 0 : i32
    %c0_i32_1 = arith.constant 0 : i32
    return %c0_i32, %c0_i32_0 : i32, i32
  }
  func.func @transform_5(%arg0: i32) -> (i32, i32) {
    %c0_i32 = arith.constant 0 : i32
    %c0_i32_0 = arith.constant 0 : i32
    %c0_i32_1 = arith.constant 0 : i32
    return %c0_i32, %c0_i32_0 : i32, i32
  }
  func.func @transform_6(%arg0: i32) -> (i32, i32) {
    %c0_i32 = arith.constant 0 : i32
    %c0_i32_0 = arith.constant 0 : i32
    %c0_i32_1 = arith.constant 0 : i32
    return %c0_i32, %c0_i32_0 : i32, i32
  }
  func.func @transform_7(%arg0: i32) -> (i32, i32) {
    %c0_i32 = arith.constant 0 : i32
    %c0_i32_0 = arith.constant 0 : i32
    %c0_i32_1 = arith.constant 0 : i32
    return %c0_i32, %c0_i32_0 : i32, i32
  }
  func.func @transform_8(%arg0: i32) -> (i32, i32, i32) {
    %c0_i32 = arith.constant 0 : i32
    %c0_i32_0 = arith.constant 0 : i32
    %c0_i32_1 = arith.constant 0 : i32
    %c0_i32_2 = arith.constant 0 : i32
    return %c0_i32, %c0_i32_0, %c0_i32_1 : i32, i32, i32
  }
  func.func @transform_9(%arg0: i32) -> (i32, i32) {
    %c0_i32 = arith.constant 0 : i32
    %c0_i32_0 = arith.constant 0 : i32
    %c0_i32_1 = arith.constant 0 : i32
    return %c0_i32, %c0_i32_0 : i32, i32
  }
  func.func @transform_10(%arg0: i32) -> (i32, i32) {
    %c0_i32 = arith.constant 0 : i32
    %c0_i32_0 = arith.constant 0 : i32
    %c0_i32_1 = arith.constant 0 : i32
    return %c0_i32, %c0_i32_0 : i32, i32
  }
  func.func @transform_11(%arg0: i32) -> (i32, i32) {
    %c0_i32 = arith.constant 0 : i32
    %c0_i32_0 = arith.constant 0 : i32
    %c0_i32_1 = arith.constant 0 : i32
    return %c0_i32, %c0_i32_0 : i32, i32
  }
  func.func @transform_12(%arg0: i32) -> (i32, i32, i32) {
    %c0_i32 = arith.constant 0 : i32
    %c0_i32_0 = arith.constant 0 : i32
    %c0_i32_1 = arith.constant 0 : i32
    return %arg0, %c0_i32, %c0_i32_0 : i32, i32, i32
  }
}

</mosaic_0001>

<llo_original>
// kernel: tpu_custom_call.1
$region0: #{tpu_custom_call.1}
  #allocation0 [shape = 'u32[]', space=smem, size = 0x4, offset = 0x4, fixed_abs, tag = 'smem constant byte address 0x4 - core index']
  #allocation1 [shape = 'u32[72,128]{1,0:T(1,128)}', space=vmem, size = 0x9000, scoped, tag = 'internal scratch']
  %s0 = inlined_call_operand.hbm [shape: f32[2,16,256], index: 0, kind: input, shape index: {}]
  %s1 = inlined_call_operand.hbm [shape: f32[2,16,256], index: 1, kind: input, shape index: {}]
  %s2 = inlined_call_operand.vmem [shape: f32[16,2], index: 2, kind: input, shape index: {}]
  %s3 = inlined_call_operand.vmem [shape: f32[16,2], index: 3, kind: input, shape index: {}]
  %s4 = inlined_call_operand.vmem [shape: f32[16,2], index: 4, kind: input, shape index: {}]
  %s5 = inlined_call_operand.vmem [shape: f32[16,2], index: 5, kind: input, shape index: {}]
  %s6 = inlined_call_operand.vmem [shape: f32[2,16], index: 6, kind: input, shape index: {}]
  %s7 = inlined_call_operand.vmem [shape: f32[2,16], index: 7, kind: input, shape index: {}]
  %s8 = inlined_call_operand.hbm [shape: f32[49,1,256], index: 8, kind: input, shape index: {}]
  %s9 = inlined_call_operand.vmem [shape: f32[16,16], index: 9, kind: input, shape index: {}]
  %s10 = inlined_call_operand.vmem [shape: f32[16,16], index: 10, kind: input, shape index: {}]
  %s11 = inlined_call_operand.vmem [shape: f32[16,1], index: 11, kind: input, shape index: {}]
  %s12 = inlined_call_operand.hbm [shape: f32[2,16,256], index: 12, kind: output, shape index: {}]
  %s13 = sld [smem:[#allocation0]]
  $region93: #{tpu_custom_call.1} parent=0
    _
  %s15 = ssub.s32 1, %s13
  %s16 = scalar_select 0, %s15, %s13
  $region1: #{tpu_custom_call.1} parent=0
    #allocation2 [shape = 'u8[32768]{0}', space=vmem, size = 0x8000, scoped, tag = 'input window, operand 0']
    #allocation3 [shape = 's32[2]{0}', space=sflag, size = 0x8, scoped, tag = 'scoped memory for tpu_custom_call.1']
    #allocation4 [shape = 's32[2]{0}', space=sflag, size = 0x8, scoped, tag = 'scoped memory for tpu_custom_call.1']
    #allocation5 [shape = 'u8[32768]{0}', space=vmem, size = 0x8000, scoped, tag = 'input window, operand 1']
    #allocation6 [shape = 's32[2]{0}', space=sflag, size = 0x8, scoped, tag = 'scoped memory for tpu_custom_call.1']
    #allocation7 [shape = 'u8[50176]{0}', space=vmem, size = 0xc400, scoped, tag = 'input window, operand 8, single buffered']
    #allocation8 [shape = 'u8[32768]{0}', space=vmem, size = 0x8000, scoped, tag = 'output window, operand 0']
    %17 = vsyncpa [#allocation3], 0
    %s18 = scalar_lea.sflag [#allocation3], 1
    %19 = vsyncpa %s18, 0
    %20 = vsyncpa [#allocation6], 0
    %s21 = scalar_lea.sflag [#allocation6], 1
    %22 = vsyncpa %s21, 0
    %23 = vsyncpa [#allocation4], 0
    %s24 = scalar_lea.sflag [#allocation4], 1
    %25 = vsyncpa %s24, 0
    loop: start=0, step=1, limit=4
    $region2: #{tpu_custom_call.1} parent=1 // loop_pre_header
      _
    $region3: #{tpu_custom_call.1} parent=1 // loop_header
      %s27 = sphi 0, %s31
      %p28 = scmp.ge.s32.totalorder %s27, 4
      %s37 = sphi 0, %s39
      %s40 = sphi 0, %s37
      %s41 = sphi 0, %s40
      %s57 = sphi 0, %s41
      %s63 = sphi 0, %s65
      %s66 = sphi 0, %s63
      %s67 = sphi 0, %s66
      %s83 = sphi 0, %s67
      %s87 = sphi 0, %s87
      %s89 = sphi 0, %s87
      %s90 = sphi 0, %s89
      %s104 = sphi 0, %s90
      %s108 = sphi 0, %s108
      %s110 = sphi 0, %s108
      %s111 = sphi 0, %s110
      %s125 = sphi 0, %s111
      %s129 = sphi 0, %s129
      %s131 = sphi 0, %s129
      %s132 = sphi 0, %s131
      %s146 = sphi 0, %s132
      %s150 = sphi 0, %s150
      %s152 = sphi 0, %s150
      %s153 = sphi 0, %s152
      %s167 = sphi 0, %s153
      %s171 = sphi 0, %s171
      %s173 = sphi 0, %s171
      %s174 = sphi 0, %s173
      %s188 = sphi 0, %s174
      %s192 = sphi 0, %s192
      %s194 = sphi 0, %s192
      %s195 = sphi 0, %s194
      %s209 = sphi 0, %s195
      %s213 = sphi 0, %s213
      %s215 = sphi 0, %s213
      %s216 = sphi 0, %s215
      %s230 = sphi 0, %s216
      %s234 = sphi 0, %s234
      %s236 = sphi 0, %s234
      %s237 = sphi 0, %s236
      %s251 = sphi 0, %s237
      %s255 = sphi 0, %s255
      %s257 = sphi 0, %s255
      %s258 = sphi 0, %s257
      %s272 = sphi 0, %s258
      %s276 = sphi 0, %s276
      %s278 = sphi 0, %s276
      %s279 = sphi 0, %s278
      %s293 = sphi 0, %s279
      %s299 = sphi 0, %s301
      %s302 = sphi 0, %s299
      %s303 = sphi 0, %s302
      %s319 = sphi 0, %s303
    $region4: #{tpu_custom_call.1} parent=1 // loop_header_branch
      %30 = sbr.rel (%p28) target = $region8
    $region5: #{tpu_custom_call.1} parent=1 // loop_body
      %s32 = ssub.s32 %s27, 1
      %s33 = ssub.s32 %s27, 2
      %s34 = sadd.s32 %s27, 1
      %s35 = ssub.s32 %s27, %s34
      %p36 = scmp.eq.s32.totalorder %s35, 0
      %s38 = sadd.s32 %s37, 1
      %s39 = scalar_select %p36, %s37, %s38
      %p42 = pneg %p36
      %p43 = scmp.eq.s32.totalorder %s27, 1
      %p44 = por %p42, %p43
      %p45 = scmp.ne.s32.totalorder %s37, %s40
      %p46 = scmp.eq.s32.totalorder %s27, 0
      %p47 = por %p45, %p46
      %p48 = scmp.ne.s32.totalorder %s37, %s40
      %p49 = scmp.eq.s32.totalorder %s32, 1
      %p50 = por %p48, %p49
      %p51 = scmp.ne.s32.totalorder %s40, %s41
      %p52 = scmp.eq.s32.totalorder %s32, 0
      %p53 = por %p51, %p52
      %p54 = scmp.ne.s32.totalorder %s40, %s41
      %p55 = scmp.eq.s32.totalorder %s33, 1
      %p56 = por %p54, %p55
      %p58 = scmp.ne.s32.totalorder %s41, %s57
      %p59 = scmp.eq.s32.totalorder %s33, 0
      %p60 = por %p58, %p59
      %s61 = ssub.s32 %s27, %s34
      %p62 = scmp.eq.s32.totalorder %s61, 0
      %s64 = sadd.s32 %s63, 1
      %s65 = scalar_select %p62, %s63, %s64
      %p68 = pneg %p62
      %p69 = scmp.eq.s32.totalorder %s27, 1
      %p70 = por %p68, %p69
      %p71 = scmp.ne.s32.totalorder %s63, %s66
      %p72 = scmp.eq.s32.totalorder %s27, 0
      %p73 = por %p71, %p72
      %p74 = scmp.ne.s32.totalorder %s63, %s66
      %p75 = scmp.eq.s32.totalorder %s32, 1
      %p76 = por %p74, %p75
      %p77 = scmp.ne.s32.totalorder %s66, %s67
      %p78 = scmp.eq.s32.totalorder %s32, 0
      %p79 = por %p77, %p78
      %p80 = scmp.ne.s32.totalorder %s66, %s67
      %p81 = scmp.eq.s32.totalorder %s33, 1
      %p82 = por %p80, %p81
      %p84 = scmp.ne.s32.totalorder %s67, %s83
      %p85 = scmp.eq.s32.totalorder %s33, 0
      %p86 = por %p84, %p85
      %s88 = sadd.s32 %s87, 1
      %p91 = scmp.eq.s32.totalorder %s27, 1
      %p92 = scmp.ne.s32.totalorder %s87, %s89
      %p93 = scmp.eq.s32.totalorder %s27, 0
      %p94 = por %p92, %p93
      %p95 = scmp.ne.s32.totalorder %s87, %s89
      %p96 = scmp.eq.s32.totalorder %s32, 1
      %p97 = por %p95, %p96
      %p98 = scmp.ne.s32.totalorder %s89, %s90
      %p99 = scmp.eq.s32.totalorder %s32, 0
      %p100 = por %p98, %p99
      %p101 = scmp.ne.s32.totalorder %s89, %s90
      %p102 = scmp.eq.s32.totalorder %s33, 1
      %p103 = por %p101, %p102
      %p105 = scmp.ne.s32.totalorder %s90, %s104
      %p106 = scmp.eq.s32.totalorder %s33, 0
      %p107 = por %p105, %p106
      %s109 = sadd.s32 %s108, 1
      %p112 = scmp.eq.s32.totalorder %s27, 1
      %p113 = scmp.ne.s32.totalorder %s108, %s110
      %p114 = scmp.eq.s32.totalorder %s27, 0
      %p115 = por %p113, %p114
      %p116 = scmp.ne.s32.totalorder %s108, %s110
      %p117 = scmp.eq.s32.totalorder %s32, 1
      %p118 = por %p116, %p117
      %p119 = scmp.ne.s32.totalorder %s110, %s111
      %p120 = scmp.eq.s32.totalorder %s32, 0
      %p121 = por %p119, %p120
      %p122 = scmp.ne.s32.totalorder %s110, %s111
      %p123 = scmp.eq.s32.totalorder %s33, 1
      %p124 = por %p122, %p123
      %p126 = scmp.ne.s32.totalorder %s111, %s125
      %p127 = scmp.eq.s32.totalorder %s33, 0
      %p128 = por %p126, %p127
      %s130 = sadd.s32 %s129, 1
      %p133 = scmp.eq.s32.totalorder %s27, 1
      %p134 = scmp.ne.s32.totalorder %s129, %s131
      %p135 = scmp.eq.s32.totalorder %s27, 0
      %p136 = por %p134, %p135
      %p137 = scmp.ne.s32.totalorder %s129, %s131
      %p138 = scmp.eq.s32.totalorder %s32, 1
      %p139 = por %p137, %p138
      %p140 = scmp.ne.s32.totalorder %s131, %s132
      %p141 = scmp.eq.s32.totalorder %s32, 0
      %p142 = por %p140, %p141
      %p143 = scmp.ne.s32.totalorder %s131, %s132
      %p144 = scmp.eq.s32.totalorder %s33, 1
      %p145 = por %p143, %p144
      %p147 = scmp.ne.s32.totalorder %s132, %s146
      %p148 = scmp.eq.s32.totalorder %s33, 0
      %p149 = por %p147, %p148
      %s151 = sadd.s32 %s150, 1
      %p154 = scmp.eq.s32.totalorder %s27, 1
      %p155 = scmp.ne.s32.totalorder %s150, %s152
      %p156 = scmp.eq.s32.totalorder %s27, 0
      %p157 = por %p155, %p156
      %p158 = scmp.ne.s32.totalorder %s150, %s152
      %p159 = scmp.eq.s32.totalorder %s32, 1
      %p160 = por %p158, %p159
      %p161 = scmp.ne.s32.totalorder %s152, %s153
      %p162 = scmp.eq.s32.totalorder %s32, 0
      %p163 = por %p161, %p162
      %p164 = scmp.ne.s32.totalorder %s152, %s153
      %p165 = scmp.eq.s32.totalorder %s33, 1
      %p166 = por %p164, %p165
      %p168 = scmp.ne.s32.totalorder %s153, %s167
      %p169 = scmp.eq.s32.totalorder %s33, 0
      %p170 = por %p168, %p169
      %s172 = sadd.s32 %s171, 1
      %p175 = scmp.eq.s32.totalorder %s27, 1
      %p176 = scmp.ne.s32.totalorder %s171, %s173
      %p177 = scmp.eq.s32.totalorder %s27, 0
      %p178 = por %p176, %p177
      %p179 = scmp.ne.s32.totalorder %s171, %s173
      %p180 = scmp.eq.s32.totalorder %s32, 1
      %p181 = por %p179, %p180
      %p182 = scmp.ne.s32.totalorder %s173, %s174
      %p183 = scmp.eq.s32.totalorder %s32, 0
      %p184 = por %p182, %p183
      %p185 = scmp.ne.s32.totalorder %s173, %s174
      %p186 = scmp.eq.s32.totalorder %s33, 1
      %p187 = por %p185, %p186
      %p189 = scmp.ne.s32.totalorder %s174, %s188
      %p190 = scmp.eq.s32.totalorder %s33, 0
      %p191 = por %p189, %p190
      %s193 = sadd.s32 %s192, 1
      %p196 = scmp.eq.s32.totalorder %s27, 1
      %p197 = scmp.ne.s32.totalorder %s192, %s194
      %p198 = scmp.eq.s32.totalorder %s27, 0
      %p199 = por %p197, %p198
      %p200 = scmp.ne.s32.totalorder %s192, %s194
      %p201 = scmp.eq.s32.totalorder %s32, 1
      %p202 = por %p200, %p201
      %p203 = scmp.ne.s32.totalorder %s194, %s195
      %p204 = scmp.eq.s32.totalorder %s32, 0
      %p205 = por %p203, %p204
      %p206 = scmp.ne.s32.totalorder %s194, %s195
      %p207 = scmp.eq.s32.totalorder %s33, 1
      %p208 = por %p206, %p207
      %p210 = scmp.ne.s32.totalorder %s195, %s209
      %p211 = scmp.eq.s32.totalorder %s33, 0
      %p212 = por %p210, %p211
      %s214 = sadd.s32 %s213, 1
      %p217 = scmp.eq.s32.totalorder %s27, 1
      %p218 = scmp.ne.s32.totalorder %s213, %s215
      %p219 = scmp.eq.s32.totalorder %s27, 0
      %p220 = por %p218, %p219
      %p221 = scmp.ne.s32.totalorder %s213, %s215
      %p222 = scmp.eq.s32.totalorder %s32, 1
      %p223 = por %p221, %p222
      %p224 = scmp.ne.s32.totalorder %s215, %s216
      %p225 = scmp.eq.s32.totalorder %s32, 0
      %p226 = por %p224, %p225
      %p227 = scmp.ne.s32.totalorder %s215, %s216
      %p228 = scmp.eq.s32.totalorder %s33, 1
      %p229 = por %p227, %p228
      %p231 = scmp.ne.s32.totalorder %s216, %s230
      %p232 = scmp.eq.s32.totalorder %s33, 0
      %p233 = por %p231, %p232
      %s235 = sadd.s32 %s234, 1
      %p238 = scmp.eq.s32.totalorder %s27, 1
      %p239 = scmp.ne.s32.totalorder %s234, %s236
      %p240 = scmp.eq.s32.totalorder %s27, 0
      %p241 = por %p239, %p240
      %p242 = scmp.ne.s32.totalorder %s234, %s236
      %p243 = scmp.eq.s32.totalorder %s32, 1
      %p244 = por %p242, %p243
      %p245 = scmp.ne.s32.totalorder %s236, %s237
      %p246 = scmp.eq.s32.totalorder %s32, 0
      %p247 = por %p245, %p246
      %p248 = scmp.ne.s32.totalorder %s236, %s237
      %p249 = scmp.eq.s32.totalorder %s33, 1
      %p250 = por %p248, %p249
      %p252 = scmp.ne.s32.totalorder %s237, %s251
      %p253 = scmp.eq.s32.totalorder %s33, 0
      %p254 = por %p252, %p253
      %s256 = sadd.s32 %s255, 1
      %p259 = scmp.eq.s32.totalorder %s27, 1
      %p260 = scmp.ne.s32.totalorder %s255, %s257
      %p261 = scmp.eq.s32.totalorder %s27, 0
      %p262 = por %p260, %p261
      %p263 = scmp.ne.s32.totalorder %s255, %s257
      %p264 = scmp.eq.s32.totalorder %s32, 1
      %p265 = por %p263, %p264
      %p266 = scmp.ne.s32.totalorder %s257, %s258
      %p267 = scmp.eq.s32.totalorder %s32, 0
      %p268 = por %p266, %p267
      %p269 = scmp.ne.s32.totalorder %s257, %s258
      %p270 = scmp.eq.s32.totalorder %s33, 1
      %p271 = por %p269, %p270
      %p273 = scmp.ne.s32.totalorder %s258, %s272
      %p274 = scmp.eq.s32.totalorder %s33, 0
      %p275 = por %p273, %p274
      %s277 = sadd.s32 %s276, 1
      %p280 = scmp.eq.s32.totalorder %s27, 1
      %p281 = scmp.ne.s32.totalorder %s276, %s278
      %p282 = scmp.eq.s32.totalorder %s27, 0
      %p283 = por %p281, %p282
      %p284 = scmp.ne.s32.totalorder %s276, %s278
      %p285 = scmp.eq.s32.totalorder %s32, 1
      %p286 = por %p284, %p285
      %p287 = scmp.ne.s32.totalorder %s278, %s279
      %p288 = scmp.eq.s32.totalorder %s32, 0
      %p289 = por %p287, %p288
      %p290 = scmp.ne.s32.totalorder %s278, %s279
      %p291 = scmp.eq.s32.totalorder %s33, 1
      %p292 = por %p290, %p291
      %p294 = scmp.ne.s32.totalorder %s279, %s293
      %p295 = scmp.eq.s32.totalorder %s33, 0
      %p296 = por %p294, %p295
      %s297 = ssub.s32 %s27, %s34
      %p298 = scmp.eq.s32.totalorder %s297, 0
      %s300 = sadd.s32 %s299, 1
      %s301 = scalar_select %p298, %s299, %s300
      %p304 = pneg %p298
      %p305 = scmp.eq.s32.totalorder %s27, 1
      %p306 = por %p304, %p305
      %p307 = scmp.ne.s32.totalorder %s299, %s302
      %p308 = scmp.eq.s32.totalorder %s27, 0
      %p309 = por %p307, %p308
      %p310 = scmp.ne.s32.totalorder %s299, %s302
      %p311 = scmp.eq.s32.totalorder %s32, 1
      %p312 = por %p310, %p311
      %p313 = scmp.ne.s32.totalorder %s302, %s303
      %p314 = scmp.eq.s32.totalorder %s32, 0
      %p315 = por %p313, %p314
      %p316 = scmp.ne.s32.totalorder %s302, %s303
      %p317 = scmp.eq.s32.totalorder %s33, 1
      %p318 = por %p316, %p317
      %p320 = scmp.ne.s32.totalorder %s303, %s319
      %p321 = scmp.eq.s32.totalorder %s33, 0
      %p322 = por %p320, %p321
      %p323 = scmp.le.s32.totalorder 1, %s27
      %p324 = scmp.lt.s32.totalorder %s27, 3
      %p325 = pnand %p323, %p324
      %p326 = pneg %p325
      // Predicated region
      $region9: #{tpu_custom_call.1} parent=5 // pred_check
        _
      $region10: #{tpu_custom_call.1} parent=5 // pred_check_branch
        %328 = sbr.rel (%p325) target = $region12
      $region11: #{tpu_custom_call.1} parent=5 // pred_region
        %s329 = ssub.s32 %s27, 1
        // Predicated region
        $region13: #{tpu_custom_call.1} parent=11 // pred_check
          %p330 = pneg %p100
        $region14: #{tpu_custom_call.1} parent=11 // pred_check_branch
          %332 = sbr.rel (%p330) target = $region16
        $region15: #{tpu_custom_call.1} parent=11 // pred_region
          _
        $region16: #{tpu_custom_call.1} parent=11 // pred_fallthru
          _
        // Predicated region
        $region17: #{tpu_custom_call.1} parent=11 // pred_check
          %p333 = pneg %p121
        $region18: #{tpu_custom_call.1} parent=11 // pred_check_branch
          %335 = sbr.rel (%p333) target = $region20
        $region19: #{tpu_custom_call.1} parent=11 // pred_region
          _
        $region20: #{tpu_custom_call.1} parent=11 // pred_fallthru
          _
        // Predicated region
        $region21: #{tpu_custom_call.1} parent=11 // pred_check
          %p336 = pneg %p142
        $region22: #{tpu_custom_call.1} parent=11 // pred_check_branch
          %338 = sbr.rel (%p336) target = $region24
        $region23: #{tpu_custom_call.1} parent=11 // pred_region
          _
        $region24: #{tpu_custom_call.1} parent=11 // pred_fallthru
          _
        // Predicated region
        $region25: #{tpu_custom_call.1} parent=11 // pred_check
          %p339 = pneg %p163
        $region26: #{tpu_custom_call.1} parent=11 // pred_check_branch
          %341 = sbr.rel (%p339) target = $region28
        $region27: #{tpu_custom_call.1} parent=11 // pred_region
          _
        $region28: #{tpu_custom_call.1} parent=11 // pred_fallthru
          _
        // Predicated region
        $region29: #{tpu_custom_call.1} parent=11 // pred_check
          %p342 = pneg %p184
        $region30: #{tpu_custom_call.1} parent=11 // pred_check_branch
          %344 = sbr.rel (%p342) target = $region32
        $region31: #{tpu_custom_call.1} parent=11 // pred_region
          _
        $region32: #{tpu_custom_call.1} parent=11 // pred_fallthru
          _
        // Predicated region
        $region33: #{tpu_custom_call.1} parent=11 // pred_check
          %p345 = pneg %p205
        $region34: #{tpu_custom_call.1} parent=11 // pred_check_branch
          %347 = sbr.rel (%p345) target = $region36
        $region35: #{tpu_custom_call.1} parent=11 // pred_region
          _
        $region36: #{tpu_custom_call.1} parent=11 // pred_fallthru
          _
        // Predicated region
        $region37: #{tpu_custom_call.1} parent=11 // pred_check
          %p348 = pneg %p226
        $region38: #{tpu_custom_call.1} parent=11 // pred_check_branch
          %350 = sbr.rel (%p348) target = $region40
        $region39: #{tpu_custom_call.1} parent=11 // pred_region
          %352 = vsyncadd [#allocation6], 0
          %s353 = sshll.u32 %s8, 4
          %s354 = int_to_ptr.hbm [resolvable:$true] %s353
          %s355 = sshll.u32 [#allocation7], 4
          %s356 = int_to_ptr.vmem [resolvable:$true] %s355
          %361 = dma.hbm_to_vmem [thread:$0]  %s354, 1568, %s356, [#allocation6], 32, 32, 2
        $region40: #{tpu_custom_call.1} parent=11 // pred_fallthru
          _
        // Predicated region
        $region41: #{tpu_custom_call.1} parent=11 // pred_check
          %p362 = pneg %p247
        $region42: #{tpu_custom_call.1} parent=11 // pred_check_branch
          %364 = sbr.rel (%p362) target = $region44
        $region43: #{tpu_custom_call.1} parent=11 // pred_region
          _
        $region44: #{tpu_custom_call.1} parent=11 // pred_fallthru
          _
        // Predicated region
        $region45: #{tpu_custom_call.1} parent=11 // pred_check
          %p365 = pneg %p268
        $region46: #{tpu_custom_call.1} parent=11 // pred_check_branch
          %367 = sbr.rel (%p365) target = $region48
        $region47: #{tpu_custom_call.1} parent=11 // pred_region
          _
        $region48: #{tpu_custom_call.1} parent=11 // pred_fallthru
          _
        // Predicated region
        $region49: #{tpu_custom_call.1} parent=11 // pred_check
          %p368 = pneg %p289
        $region50: #{tpu_custom_call.1} parent=11 // pred_check_branch
          %370 = sbr.rel (%p368) target = $region52
        $region51: #{tpu_custom_call.1} parent=11 // pred_region
          _
        $region52: #{tpu_custom_call.1} parent=11 // pred_fallthru
          _
      $region12: #{tpu_custom_call.1} parent=5 // pred_fallthru
        _
      %p371 = scmp.lt.s32.totalorder %s27, 2
      // Predicated region
      $region53: #{tpu_custom_call.1} parent=5 // pred_check
        %p372 = pneg %p371
      $region54: #{tpu_custom_call.1} parent=5 // pred_check_branch
        %374 = sbr.rel (%p372) target = $region56
      $region55: #{tpu_custom_call.1} parent=5 // pred_region
        // Predicated region
        $region57: #{tpu_custom_call.1} parent=55 // pred_check
          %p375 = pneg %p47
        $region58: #{tpu_custom_call.1} parent=55 // pred_check_branch
          %377 = sbr.rel (%p375) target = $region60
        $region59: #{tpu_custom_call.1} parent=55 // pred_region
          %s378 = sand.u32 %s37, 1
          %s379 = scalar_lea.sflag [#allocation3], %s378
          %s380 = sand.u32 %s37, 1
          %s381 = smul.addr %s380, 32
          %s382 = scalar_lea.vmem [#allocation2], %s381
          %384 = vsyncadd %s379, 0
          %s385 = smul.addr %s27, 4
          %s386 = smul.addr %s385, 8
          %s387 = scalar_lea.hbm %s0, %s386
          %s388 = sshll.u32 %s387, 4
          %s389 = int_to_ptr.hbm [resolvable:$true] %s388
          %s390 = sshll.u32 %s382, 4
          %s391 = int_to_ptr.vmem [resolvable:$true] %s390
          %396 = dma.hbm_to_vmem [thread:$0]  %s389, 512, %s391, %s379, 256, 256, 16
        $region60: #{tpu_custom_call.1} parent=55 // pred_fallthru
          _
        // Predicated region
        $region61: #{tpu_custom_call.1} parent=55 // pred_check
          %p397 = pneg %p73
        $region62: #{tpu_custom_call.1} parent=55 // pred_check_branch
          %399 = sbr.rel (%p397) target = $region64
        $region63: #{tpu_custom_call.1} parent=55 // pred_region
          %s400 = sand.u32 %s27, 1
          %s401 = scalar_lea.sflag [#allocation6], %s400
          %s402 = sand.u32 %s63, 1
          %s403 = smul.addr %s402, 32
          %s404 = scalar_lea.vmem [#allocation5], %s403
          %406 = vsyncadd %s401, 0
          %s407 = smul.addr %s27, 4
          %s408 = smul.addr %s407, 8
          %s409 = scalar_lea.hbm %s1, %s408
          %s410 = sshll.u32 %s409, 4
          %s411 = int_to_ptr.hbm [resolvable:$true] %s410
          %s412 = sshll.u32 %s404, 4
          %s413 = int_to_ptr.vmem [resolvable:$true] %s412
          %418 = dma.hbm_to_vmem [thread:$0]  %s411, 512, %s413, %s401, 256, 256, 16
        $region64: #{tpu_custom_call.1} parent=55 // pred_fallthru
          _
      $region56: #{tpu_custom_call.1} parent=5 // pred_fallthru
        _
      %p419 = scmp.le.s32.totalorder 1, %s27
      %p420 = scmp.lt.s32.totalorder %s27, 3
      %p421 = pnand %p419, %p420
      %p422 = pneg %p421
      // Predicated region
      $region65: #{tpu_custom_call.1} parent=5 // pred_check
        _
      $region66: #{tpu_custom_call.1} parent=5 // pred_check_branch
        %424 = sbr.rel (%p421) target = $region68
      $region67: #{tpu_custom_call.1} parent=5 // pred_region
        %s425 = ssub.s32 %s27, 1
        %s426 = sand.u32 %s40, 1
        %s427 = scalar_lea.sflag [#allocation3], %s426
        %s428 = sand.u32 %s40, 1
        %s429 = smul.addr %s428, 32
        %s430 = scalar_lea.vmem [#allocation2], %s429
        // Predicated region
        $region69: #{tpu_custom_call.1} parent=67 // pred_check
          %p431 = pneg %p53
        $region70: #{tpu_custom_call.1} parent=67 // pred_check_branch
          %433 = sbr.rel (%p431) target = $region72
        $region71: #{tpu_custom_call.1} parent=67 // pred_region
          %435 = dma.done %s427, 512
        $region72: #{tpu_custom_call.1} parent=67 // pred_fallthru
          _
        %s436 = sand.u32 %s32, 1
        %s437 = scalar_lea.sflag [#allocation6], %s436
        %s438 = sand.u32 %s66, 1
        %s439 = smul.addr %s438, 32
        %s440 = scalar_lea.vmem [#allocation5], %s439
        // Predicated region
        $region73: #{tpu_custom_call.1} parent=67 // pred_check
          %p441 = pneg %p79
        $region74: #{tpu_custom_call.1} parent=67 // pred_check_branch
          %443 = sbr.rel (%p441) target = $region76
        $region75: #{tpu_custom_call.1} parent=67 // pred_region
          %445 = dma.done %s437, 512
        $region76: #{tpu_custom_call.1} parent=67 // pred_fallthru
          _
        // Predicated region
        $region77: #{tpu_custom_call.1} parent=67 // pred_check
          %p446 = pneg %p226
        $region78: #{tpu_custom_call.1} parent=67 // pred_check_branch
          %448 = sbr.rel (%p446) target = $region80
        $region79: #{tpu_custom_call.1} parent=67 // pred_region
          %450 = dma.done [#allocation6], 1568
        $region80: #{tpu_custom_call.1} parent=67 // pred_fallthru
          _
        %s451 = sand.u32 %s40, 1
        %s452 = scalar_lea.sflag [#allocation3], %s451
        %s453 = sand.u32 %s40, 1
        %s454 = smul.addr %s453, 32
        %s455 = scalar_lea.vmem [#allocation2], %s454
        %p456 = pneg %p53
        %p457 = pneg %p50
        %s458 = sand.u32 %s32, 1
        %s459 = scalar_lea.sflag [#allocation6], %s458
        %s460 = sand.u32 %s66, 1
        %s461 = smul.addr %s460, 32
        %s462 = scalar_lea.vmem [#allocation5], %s461
        %p463 = pneg %p79
        %p464 = pneg %p76
        %p465 = pneg %p100
        %p466 = pneg %p97
        %p467 = pneg %p121
        %p468 = pneg %p118
        %p469 = pneg %p142
        %p470 = pneg %p139
        %p471 = pneg %p163
        %p472 = pneg %p160
        %p473 = pneg %p184
        %p474 = pneg %p181
        %p475 = pneg %p205
        %p476 = pneg %p202
        %p477 = pneg %p226
        %p478 = pneg %p223
        %p479 = pneg %p247
        %p480 = pneg %p244
        %p481 = pneg %p268
        %p482 = pneg %p265
        %p483 = pneg %p289
        %p484 = pneg %p286
        %p485 = pneg %p315
        %p486 = pneg %p312
        %s487 = sand.u32 %s302, 1
        %s488 = scalar_lea.sflag [#allocation4], %s487
        %s489 = sand.u32 %s302, 1
        %s490 = smul.addr %s489, 32
        %s491 = scalar_lea.vmem [#allocation8], %s490
        %v492 = vld [vmem:[%s430] sm:$0xff]
        %v493 = vld [vmem:[%s430 + $0x8] sm:$0xff]
        %v494 = vld [vmem:[%s430 + $0x10] sm:$0xff]
        %v495 = vld [vmem:[%s430 + $0x18] sm:$0xff]
        %v496 = vld [vmem:[%s440] sm:$0xff]
        %v497 = vld [vmem:[%s440 + $0x8] sm:$0xff]
        %v498 = vld [vmem:[%s440 + $0x10] sm:$0xff]
        %v499 = vld [vmem:[%s440 + $0x18] sm:$0xff]
        %v500 = vadd.f32 %v492, %v493
        %501 = vadd.xlane.f32.xlu0 %v500
        %v502 = vpop.xlane.xlu0 %501
        %v503 = vadd.f32 %v494, %v495
        %504 = vadd.xlane.f32.xlu0 %v503
        %v505 = vpop.xlane.xlu0 %504
        %v506 = vrcp.pop 256.0
        %v507 = vmul.f32 256.0, %v506
        %v508 = vsub.f32 1.0, %v507
        %v509 = vmul.f32 %v506, %v508
        %v510 = vadd.f32 %v506, %v509
        %vm511 = vweird.f32 %v506
        %v512 = vsel %vm511, %v506, %v510
        %v513 = vmul.f32 %v502, %v512
        %v514 = vmul.f32 %v505, %v512
        %v515 = vadd.f32 %v496, %v497
        %516 = vadd.xlane.f32.xlu0 %v515
        %v517 = vpop.xlane.xlu0 %516
        %v518 = vadd.f32 %v498, %v499
        %519 = vadd.xlane.f32.xlu0 %v518
        %v520 = vpop.xlane.xlu0 %519
        %v521 = vmul.f32 %v517, %v512
        %v522 = vmul.f32 %v520, %v512
        %v523 = vld [vmem:[%s2] sm:$0xff]
        %v524 = vld [vmem:[%s2 + $0x8] sm:$0xff]
        %v525 = vmul.f32 %v523, %v513
        %v526 = vmul.f32 %v524, %v514
        %vm527 = vcmask 15360
        %v528 = vsel %vm527, %v525, 0.0
        %v529 = vsel %vm527, %v526, 0.0
        %v530 = vadd.f32 %v528, %v529
        %v531 = vrot.slane %v530, 4
        %v532 = vadd.f32 %v530, %v531
        %v533 = vrot.slane %v532, 2
        %v534 = vadd.f32 %v532, %v533
        %v535 = vrot.slane %v534, 1
        %v536 = vadd.f32 %v534, %v535
        %v537 = vld [vmem:[%s3] sm:$0xff]
        %v538 = vld [vmem:[%s3 + $0x8] sm:$0xff]
        %v539 = vmul.f32 %v537, %v521
        %v540 = vmul.f32 %v538, %v522
        %v541 = vsel %vm527, %v539, 0.0
        %v542 = vsel %vm527, %v540, 0.0
        %v543 = vadd.f32 %v541, %v542
        %v544 = vrot.slane %v543, 4
        %v545 = vadd.f32 %v543, %v544
        %v546 = vrot.slane %v545, 2
        %v547 = vadd.f32 %v545, %v546
        %v548 = vrot.slane %v547, 1
        %v549 = vadd.f32 %v547, %v548
        %v550 = vadd.f32 %v536, %v549
        %v551 = vmax.f32 %v550, 0.0
        %v552 = vld [vmem:[%s4] sm:$0xff]
        %v553 = vld [vmem:[%s4 + $0x8] sm:$0xff]
        %v554 = vmul.f32 %v552, %v551
        %v555 = vmul.f32 %v553, %v551
        %v556 = vsel %vm527, %v554, 0.0
        %557 = vadd.xlane.f32.xlu0 %v556
        %v558 = vpop.xlane.xlu0 %557
        %v559 = vsel %vm527, %v555, 0.0
        %560 = vadd.xlane.f32.xlu0 %v559
        %v561 = vpop.xlane.xlu0 %560
        %v562 = vxor.u32 %v558, 2147483648
        %v563 = vxor.u32 %v561, 2147483648
        %v564 = vmul.f32 %v562, 1.442695
        %v565 = vpow.pop %v564
        %v566 = vmul.f32 %v563, 1.442695
        %v567 = vpow.pop %v566
        %v568 = vadd.f32 %v565, 1.0
        %v569 = vadd.f32 %v567, 1.0
        %v570 = vrcp.pop %v568
        %v571 = vmul.f32 %v568, %v570
        %v572 = vsub.f32 1.0, %v571
        %v573 = vmul.f32 %v570, %v572
        %v574 = vadd.f32 %v570, %v573
        %vm575 = vweird.f32 %v568
        %vm576 = vweird.f32 %v570
        %vm577 = vmor %vm575, %vm576
        %v578 = vsel %vm577, %v570, %v574
        %v579 = vand.u32 2147483647, %v568
        %vm580 = vcmp.eq.f32.partialorder %v579, 8.507059e+37
        %v581 = vand.u32 %v568, 2147483648
        %v582 = vor.u32 1.1754944e-38, %v581
        %v583 = vsel %vm580, %v582, %v578
        %v584 = vmul.f32 1.0, %v583
        %v585 = vrcp.pop %v569
        %v586 = vmul.f32 %v569, %v585
        %v587 = vsub.f32 1.0, %v586
        %v588 = vmul.f32 %v585, %v587
        %v589 = vadd.f32 %v585, %v588
        %vm590 = vweird.f32 %v569
        %vm591 = vweird.f32 %v585
        %vm592 = vmor %vm590, %vm591
        %v593 = vsel %vm592, %v585, %v589
        %v594 = vand.u32 2147483647, %v569
        %vm595 = vcmp.eq.f32.partialorder %v594, 8.507059e+37
        %v596 = vand.u32 %v569, 2147483648
        %v597 = vor.u32 1.1754944e-38, %v596
        %v598 = vsel %vm595, %v597, %v593
        %v599 = vmul.f32 1.0, %v598
        %v600 = vld [vmem:[%s5] sm:$0xff]
        %v601 = vld [vmem:[%s5 + $0x8] sm:$0xff]
        %v602 = vmul.f32 %v600, %v551
        %v603 = vmul.f32 %v601, %v551
        %v604 = vsel %vm527, %v602, 0.0
        %605 = vadd.xlane.f32.xlu0 %v604
        %v606 = vpop.xlane.xlu0 %605
        %v607 = vsel %vm527, %v603, 0.0
        %608 = vadd.xlane.f32.xlu0 %v607
        %v609 = vpop.xlane.xlu0 %608
        %v610 = vxor.u32 %v606, 2147483648
        %v611 = vxor.u32 %v609, 2147483648
        %v612 = vmul.f32 %v610, 1.442695
        %v613 = vpow.pop %v612
        %v614 = vmul.f32 %v611, 1.442695
        %v615 = vpow.pop %v614
        %v616 = vadd.f32 %v613, 1.0
        %v617 = vadd.f32 %v615, 1.0
        %v618 = vrcp.pop %v616
        %v619 = vmul.f32 %v616, %v618
        %v620 = vsub.f32 1.0, %v619
        %v621 = vmul.f32 %v618, %v620
        %v622 = vadd.f32 %v618, %v621
        %vm623 = vweird.f32 %v616
        %vm624 = vweird.f32 %v618
        %vm625 = vmor %vm623, %vm624
        %v626 = vsel %vm625, %v618, %v622
        %v627 = vand.u32 2147483647, %v616
        %vm628 = vcmp.eq.f32.partialorder %v627, 8.507059e+37
        %v629 = vand.u32 %v616, 2147483648
        %v630 = vor.u32 1.1754944e-38, %v629
        %v631 = vsel %vm628, %v630, %v626
        %v632 = vmul.f32 1.0, %v631
        %v633 = vrcp.pop %v617
        %v634 = vmul.f32 %v617, %v633
        %v635 = vsub.f32 1.0, %v634
        %v636 = vmul.f32 %v633, %v635
        %v637 = vadd.f32 %v633, %v636
        %vm638 = vweird.f32 %v617
        %vm639 = vweird.f32 %v633
        %vm640 = vmor %vm638, %vm639
        %v641 = vsel %vm640, %v633, %v637
        %v642 = vand.u32 2147483647, %v617
        %vm643 = vcmp.eq.f32.partialorder %v642, 8.507059e+37
        %v644 = vand.u32 %v617, 2147483648
        %v645 = vor.u32 1.1754944e-38, %v644
        %v646 = vsel %vm643, %v645, %v641
        %v647 = vmul.f32 1.0, %v646
        %v648 = vld [vmem:[%s6] sm:$0x3]
        %v650 = vsel %vm527, %v551, 0
        %vm652 = vcmask 1041408
        %v654 = vsel %vm652, %v648, 0
        %656 = vmatpush.msra.mxu0 0.0
        %657 = vmatpush.msra.mxu0 0.0
        %658 = vmatpush.msra.mxu0 0.0
        %659 = vmatpush.msra.mxu0 0.0
        %660 = vmatpush.msra.mxu0 0.0
        %661 = vmatpush.msra.mxu0 0.0
        %662 = vmatpush.msra.mxu0 0.0
        %663 = vmatpush.msra.mxu0 0.0
        %664 = vmatpush.msra.mxu0 0.0
        %665 = vmatpush.msra.mxu0 0.0
        %666 = vmatpush.msra.mxu0 0.0
        %667 = vmatpush.msra.mxu0 0.0
        %668 = vmatpush.msra.mxu0 0.0
        %669 = vmatpush.msra.mxu0 0.0
        %670 = vmatpush.msra.mxu0 0.0
        %671 = vmatpush.msra.mxu0 %v654
        %672 = vmatmul.f32.gmra.mxu0 %v650
        %v673 = vpop.f32.mrf.mxu0
        %v674 = vadd.f32 0.0, %v673
        %675 = vdwg.mxu0
        %v676 = vxor.u32 %v674, 2147483648
        %v677 = vmul.f32 %v676, 1.442695
        %v678 = vpow.pop %v677
        %v679 = vadd.f32 %v678, 1.0
        %v680 = vrcp.pop %v679
        %v681 = vmul.f32 %v679, %v680
        %v682 = vsub.f32 1.0, %v681
        %v683 = vmul.f32 %v680, %v682
        %v684 = vadd.f32 %v680, %v683
        %vm685 = vweird.f32 %v679
        %vm686 = vweird.f32 %v680
        %vm687 = vmor %vm685, %vm686
        %v688 = vsel %vm687, %v680, %v684
        %v689 = vand.u32 2147483647, %v679
        %vm690 = vcmp.eq.f32.partialorder %v689, 8.507059e+37
        %v691 = vand.u32 %v679, 2147483648
        %v692 = vor.u32 1.1754944e-38, %v691
        %v693 = vsel %vm690, %v692, %v688
        %v694 = vmul.f32 1.0, %v693
        %v695 = vld [vmem:[%s7] sm:$0x3]
        %v697 = vsel %vm652, %v695, 0
        %699 = vmatpush.msra.mxu0 0.0
        %700 = vmatpush.msra.mxu0 0.0
        %701 = vmatpush.msra.mxu0 0.0
        %702 = vmatpush.msra.mxu0 0.0
        %703 = vmatpush.msra.mxu0 0.0
        %704 = vmatpush.msra.mxu0 0.0
        %705 = vmatpush.msra.mxu0 0.0
        %706 = vmatpush.msra.mxu0 0.0
        %707 = vmatpush.msra.mxu0 0.0
        %708 = vmatpush.msra.mxu0 0.0
        %709 = vmatpush.msra.mxu0 0.0
        %710 = vmatpush.msra.mxu0 0.0
        %711 = vmatpush.msra.mxu0 0.0
        %712 = vmatpush.msra.mxu0 0.0
        %713 = vmatpush.msra.mxu0 0.0
        %714 = vmatpush.msra.mxu0 %v697
        %715 = vmatmul.f32.gmra.mxu0 %v650
        %v716 = vpop.f32.mrf.mxu0
        %v717 = vadd.f32 0.0, %v716
        %718 = vdwg.mxu0
        %v719 = vxor.u32 %v717, 2147483648
        %v720 = vmul.f32 %v719, 1.442695
        %v721 = vpow.pop %v720
        %v722 = vadd.f32 %v721, 1.0
        %v723 = vrcp.pop %v722
        %v724 = vmul.f32 %v722, %v723
        %v725 = vsub.f32 1.0, %v724
        %v726 = vmul.f32 %v723, %v725
        %v727 = vadd.f32 %v723, %v726
        %vm728 = vweird.f32 %v722
        %vm729 = vweird.f32 %v723
        %vm730 = vmor %vm728, %vm729
        %v731 = vsel %vm730, %v723, %v727
        %v732 = vand.u32 2147483647, %v722
        %vm733 = vcmp.eq.f32.partialorder %v732, 8.507059e+37
        %v734 = vand.u32 %v722, 2147483648
        %v735 = vor.u32 1.1754944e-38, %v734
        %v736 = vsel %vm733, %v735, %v731
        %v737 = vmul.f32 1.0, %v736
        %v738 = vmul.f32 %v492, %v584
        %v739 = vmul.f32 %v493, %v584
        %v740 = vmul.f32 %v494, %v599
        %v741 = vmul.f32 %v495, %v599
        %v742 = vmax.f32 %v738, %v740
        %v743 = vrot.slane %v742, 4
        %v744 = vmax.f32 %v742, %v743
        %v745 = vrot.slane %v744, 2
        %v746 = vmax.f32 %v744, %v745
        %v747 = vrot.slane %v746, 1
        %v748 = vmax.f32 %v746, %v747
        %v749 = vmax.f32 %v739, %v741
        %v750 = vrot.slane %v749, 4
        %v751 = vmax.f32 %v749, %v750
        %v752 = vrot.slane %v751, 2
        %v753 = vmax.f32 %v751, %v752
        %v754 = vrot.slane %v753, 1
        %v755 = vmax.f32 %v753, %v754
        %v756 = vmul.f32 %v496, %v632
        %v757 = vmul.f32 %v497, %v632
        %v758 = vmul.f32 %v498, %v647
        %v759 = vmul.f32 %v499, %v647
        %v760 = vmax.f32 %v756, %v758
        %v761 = vrot.slane %v760, 4
        %v762 = vmax.f32 %v760, %v761
        %v763 = vrot.slane %v762, 2
        %v764 = vmax.f32 %v762, %v763
        %v765 = vrot.slane %v764, 1
        %v766 = vmax.f32 %v764, %v765
        %v767 = vmax.f32 %v757, %v759
        %v768 = vrot.slane %v767, 4
        %v769 = vmax.f32 %v767, %v768
        %v770 = vrot.slane %v769, 2
        %v771 = vmax.f32 %v769, %v770
        %v772 = vrot.slane %v771, 1
        %v773 = vmax.f32 %v771, %v772
        %v774 = vmax.f32 %v748, %v766
        %v775 = vmax.f32 %v755, %v773
        %776 = vrot.lane.b32.xlu0 %v774, 51
        %v777 = vpop.permute.xlu0 %776
        %778 = vrot.lane.b32.xlu0 %v775, 51
        %v779 = vpop.permute.xlu0 %778
        %v780 = vlaneseq
        %v781 = vand.u32 %v780, 127
        %vm782 = vcmp.lt.s32.totalorder %v781, 51
        %v783 = vsel %vm782, %v777, %v779
        %v784 = vsel %vm782, %v779, %v777
        %v785 = vld [vmem:[#allocation7] sm:$0x3]
        %v788 = vrot.slane %v783, 7
        %vm789 = vcmask 1040384
        %v790 = vsel %vm789, %v784, %v788
        %v792 = vmul.f32 %v785, %v790
        %793 = vrot.lane.b32.xlu0 %v774, 50
        %v794 = vpop.permute.xlu0 %793
        %795 = vrot.lane.b32.xlu0 %v775, 50
        %v796 = vpop.permute.xlu0 %795
        %vm797 = vcmp.lt.s32.totalorder %v781, 50
        %v798 = vsel %vm797, %v794, %v796
        %v799 = vsel %vm797, %v796, %v794
        %s800 = scalar_lea.vmem [#allocation7], 2
        %v801 = vld [vmem:[%s800] sm:$0x3]
        %v804 = vrot.slane %v798, 7
        %v805 = vsel %vm789, %v799, %v804
        %v807 = vmul.f32 %v801, %v805
        %v808 = vadd.f32 %v792, %v807
        %809 = vrot.lane.b32.xlu0 %v774, 49
        %v810 = vpop.permute.xlu0 %809
        %811 = vrot.lane.b32.xlu0 %v775, 49
        %v812 = vpop.permute.xlu0 %811
        %vm813 = vcmp.lt.s32.totalorder %v781, 49
        %v814 = vsel %vm813, %v810, %v812
        %v815 = vsel %vm813, %v812, %v810
        %s816 = scalar_lea.vmem [#allocation7], 4
        %v817 = vld [vmem:[%s816] sm:$0x3]
        %v820 = vrot.slane %v814, 7
        %v821 = vsel %vm789, %v815, %v820
        %v823 = vmul.f32 %v817, %v821
        %v824 = vadd.f32 %v808, %v823
        %825 = vrot.lane.b32.xlu0 %v774, 48
        %v826 = vpop.permute.xlu0 %825
        %827 = vrot.lane.b32.xlu0 %v775, 48
        %v828 = vpop.permute.xlu0 %827
        %vm829 = vcmp.lt.s32.totalorder %v781, 48
        %v830 = vsel %vm829, %v826, %v828
        %v831 = vsel %vm829, %v828, %v826
        %s832 = scalar_lea.vmem [#allocation7], 6
        %v833 = vld [vmem:[%s832] sm:$0x3]
        %v836 = vrot.slane %v830, 7
        %v837 = vsel %vm789, %v831, %v836
        %v839 = vmul.f32 %v833, %v837
        %v840 = vadd.f32 %v824, %v839
        %841 = vrot.lane.b32.xlu0 %v774, 47
        %v842 = vpop.permute.xlu0 %841
        %843 = vrot.lane.b32.xlu0 %v775, 47
        %v844 = vpop.permute.xlu0 %843
        %vm845 = vcmp.lt.s32.totalorder %v781, 47
        %v846 = vsel %vm845, %v842, %v844
        %v847 = vsel %vm845, %v844, %v842
        %s848 = scalar_lea.vmem [#allocation7], 8
        %v849 = vld [vmem:[%s848] sm:$0x3]
        %v852 = vrot.slane %v846, 7
        %v853 = vsel %vm789, %v847, %v852
        %v855 = vmul.f32 %v849, %v853
        %v856 = vadd.f32 %v840, %v855
        %857 = vrot.lane.b32.xlu0 %v774, 46
        %v858 = vpop.permute.xlu0 %857
        %859 = vrot.lane.b32.xlu0 %v775, 46
        %v860 = vpop.permute.xlu0 %859
        %vm861 = vcmp.lt.s32.totalorder %v781, 46
        %v862 = vsel %vm861, %v858, %v860
        %v863 = vsel %vm861, %v860, %v858
        %s864 = scalar_lea.vmem [#allocation7], 10
        %v865 = vld [vmem:[%s864] sm:$0x3]
        %v868 = vrot.slane %v862, 7
        %v869 = vsel %vm789, %v863, %v868
        %v871 = vmul.f32 %v865, %v869
        %v872 = vadd.f32 %v856, %v871
        %873 = vrot.lane.b32.xlu0 %v774, 45
        %v874 = vpop.permute.xlu0 %873
        %875 = vrot.lane.b32.xlu0 %v775, 45
        %v876 = vpop.permute.xlu0 %875
        %vm877 = vcmp.lt.s32.totalorder %v781, 45
        %v878 = vsel %vm877, %v874, %v876
        %v879 = vsel %vm877, %v876, %v874
        %s880 = scalar_lea.vmem [#allocation7], 12
        %v881 = vld [vmem:[%s880] sm:$0x3]
        %v884 = vrot.slane %v878, 7
        %v885 = vsel %vm789, %v879, %v884
        %v887 = vmul.f32 %v881, %v885
        %v888 = vadd.f32 %v872, %v887
        %889 = vrot.lane.b32.xlu0 %v774, 35
        %v890 = vpop.permute.xlu0 %889
        %891 = vrot.lane.b32.xlu0 %v775, 35
        %v892 = vpop.permute.xlu0 %891
        %vm893 = vcmp.lt.s32.totalorder %v781, 35
        %v894 = vsel %vm893, %v890, %v892
        %v895 = vsel %vm893, %v892, %v890
        %s896 = scalar_lea.vmem [#allocation7], 14
        %v897 = vld [vmem:[%s896] sm:$0x3]
        %v900 = vrot.slane %v894, 7
        %v901 = vsel %vm789, %v895, %v900
        %v903 = vmul.f32 %v897, %v901
        %904 = vrot.lane.b32.xlu0 %v774, 34
        %v905 = vpop.permute.xlu0 %904
        %906 = vrot.lane.b32.xlu0 %v775, 34
        %v907 = vpop.permute.xlu0 %906
        %vm908 = vcmp.lt.s32.totalorder %v781, 34
        %v909 = vsel %vm908, %v905, %v907
        %v910 = vsel %vm908, %v907, %v905
        %s911 = scalar_lea.vmem [#allocation7], 16
        %v912 = vld [vmem:[%s911] sm:$0x3]
        %v915 = vrot.slane %v909, 7
        %v916 = vsel %vm789, %v910, %v915
        %v918 = vmul.f32 %v912, %v916
        %v919 = vadd.f32 %v903, %v918
        %920 = vrot.lane.b32.xlu0 %v774, 33
        %v921 = vpop.permute.xlu0 %920
        %922 = vrot.lane.b32.xlu0 %v775, 33
        %v923 = vpop.permute.xlu0 %922
        %vm924 = vcmp.lt.s32.totalorder %v781, 33
        %v925 = vsel %vm924, %v921, %v923
        %v926 = vsel %vm924, %v923, %v921
        %s927 = scalar_lea.vmem [#allocation7], 18
        %v928 = vld [vmem:[%s927] sm:$0x3]
        %v931 = vrot.slane %v925, 7
        %v932 = vsel %vm789, %v926, %v931
        %v934 = vmul.f32 %v928, %v932
        %v935 = vadd.f32 %v919, %v934
        %936 = vrot.lane.b32.xlu0 %v774, 32
        %v937 = vpop.permute.xlu0 %936
        %938 = vrot.lane.b32.xlu0 %v775, 32
        %v939 = vpop.permute.xlu0 %938
        %vm940 = vcmp.lt.s32.totalorder %v781, 32
        %v941 = vsel %vm940, %v937, %v939
        %v942 = vsel %vm940, %v939, %v937
        %s943 = scalar_lea.vmem [#allocation7], 20
        %v944 = vld [vmem:[%s943] sm:$0x3]
        %v947 = vrot.slane %v941, 7
        %v948 = vsel %vm789, %v942, %v947
        %v950 = vmul.f32 %v944, %v948
        %v951 = vadd.f32 %v935, %v950
        %952 = vrot.lane.b32.xlu0 %v774, 31
        %v953 = vpop.permute.xlu0 %952
        %954 = vrot.lane.b32.xlu0 %v775, 31
        %v955 = vpop.permute.xlu0 %954
        %vm956 = vcmp.lt.s32.totalorder %v781, 31
        %v957 = vsel %vm956, %v953, %v955
        %v958 = vsel %vm956, %v955, %v953
        %s959 = scalar_lea.vmem [#allocation7], 22
        %v960 = vld [vmem:[%s959] sm:$0x3]
        %v963 = vrot.slane %v957, 7
        %v964 = vsel %vm789, %v958, %v963
        %v966 = vmul.f32 %v960, %v964
        %v967 = vadd.f32 %v951, %v966
        %968 = vrot.lane.b32.xlu0 %v774, 30
        %v969 = vpop.permute.xlu0 %968
        %970 = vrot.lane.b32.xlu0 %v775, 30
        %v971 = vpop.permute.xlu0 %970
        %vm972 = vcmp.lt.s32.totalorder %v781, 30
        %v973 = vsel %vm972, %v969, %v971
        %v974 = vsel %vm972, %v971, %v969
        %s975 = scalar_lea.vmem [#allocation7], 24
        %v976 = vld [vmem:[%s975] sm:$0x3]
        %v979 = vrot.slane %v973, 7
        %v980 = vsel %vm789, %v974, %v979
        %v982 = vmul.f32 %v976, %v980
        %v983 = vadd.f32 %v967, %v982
        %984 = vrot.lane.b32.xlu0 %v774, 29
        %v985 = vpop.permute.xlu0 %984
        %986 = vrot.lane.b32.xlu0 %v775, 29
        %v987 = vpop.permute.xlu0 %986
        %vm988 = vcmp.lt.s32.totalorder %v781, 29
        %v989 = vsel %vm988, %v985, %v987
        %v990 = vsel %vm988, %v987, %v985
        %s991 = scalar_lea.vmem [#allocation7], 26
        %v992 = vld [vmem:[%s991] sm:$0x3]
        %v995 = vrot.slane %v989, 7
        %v996 = vsel %vm789, %v990, %v995
        %v998 = vmul.f32 %v992, %v996
        %v999 = vadd.f32 %v983, %v998
        %1000 = vrot.lane.b32.xlu0 %v774, 19
        %v1001 = vpop.permute.xlu0 %1000
        %1002 = vrot.lane.b32.xlu0 %v775, 19
        %v1003 = vpop.permute.xlu0 %1002
        %vm1004 = vcmp.lt.s32.totalorder %v781, 19
        %v1005 = vsel %vm1004, %v1001, %v1003
        %v1006 = vsel %vm1004, %v1003, %v1001
        %s1007 = scalar_lea.vmem [#allocation7], 28
        %v1008 = vld [vmem:[%s1007] sm:$0x3]
        %v1011 = vrot.slane %v1005, 7
        %v1012 = vsel %vm789, %v1006, %v1011
        %v1014 = vmul.f32 %v1008, %v1012
        %1015 = vrot.lane.b32.xlu0 %v774, 18
        %v1016 = vpop.permute.xlu0 %1015
        %1017 = vrot.lane.b32.xlu0 %v775, 18
        %v1018 = vpop.permute.xlu0 %1017
        %vm1019 = vcmp.lt.s32.totalorder %v781, 18
        %v1020 = vsel %vm1019, %v1016, %v1018
        %v1021 = vsel %vm1019, %v1018, %v1016
        %s1022 = scalar_lea.vmem [#allocation7], 30
        %v1023 = vld [vmem:[%s1022] sm:$0x3]
        %v1026 = vrot.slane %v1020, 7
        %v1027 = vsel %vm789, %v1021, %v1026
        %v1029 = vmul.f32 %v1023, %v1027
        %v1030 = vadd.f32 %v1014, %v1029
        %1031 = vrot.lane.b32.xlu0 %v774, 17
        %v1032 = vpop.permute.xlu0 %1031
        %1033 = vrot.lane.b32.xlu0 %v775, 17
        %v1034 = vpop.permute.xlu0 %1033
        %vm1035 = vcmp.lt.s32.totalorder %v781, 17
        %v1036 = vsel %vm1035, %v1032, %v1034
        %v1037 = vsel %vm1035, %v1034, %v1032
        %s1038 = scalar_lea.vmem [#allocation7], 32
        %v1039 = vld [vmem:[%s1038] sm:$0x3]
        %v1042 = vrot.slane %v1036, 7
        %v1043 = vsel %vm789, %v1037, %v1042
        %v1045 = vmul.f32 %v1039, %v1043
        %v1046 = vadd.f32 %v1030, %v1045
        %1047 = vrot.lane.b32.xlu0 %v774, 16
        %v1048 = vpop.permute.xlu0 %1047
        %1049 = vrot.lane.b32.xlu0 %v775, 16
        %v1050 = vpop.permute.xlu0 %1049
        %vm1051 = vcmp.lt.s32.totalorder %v781, 16
        %v1052 = vsel %vm1051, %v1048, %v1050
        %v1053 = vsel %vm1051, %v1050, %v1048
        %s1054 = scalar_lea.vmem [#allocation7], 34
        %v1055 = vld [vmem:[%s1054] sm:$0x3]
        %v1058 = vrot.slane %v1052, 7
        %v1059 = vsel %vm789, %v1053, %v1058
        %v1061 = vmul.f32 %v1055, %v1059
        %v1062 = vadd.f32 %v1046, %v1061
        %1063 = vrot.lane.b32.xlu0 %v774, 15
        %v1064 = vpop.permute.xlu0 %1063
        %1065 = vrot.lane.b32.xlu0 %v775, 15
        %v1066 = vpop.permute.xlu0 %1065
        %vm1067 = vcmp.lt.s32.totalorder %v781, 15
        %v1068 = vsel %vm1067, %v1064, %v1066
        %v1069 = vsel %vm1067, %v1066, %v1064
        %s1070 = scalar_lea.vmem [#allocation7], 36
        %v1071 = vld [vmem:[%s1070] sm:$0x3]
        %v1074 = vrot.slane %v1068, 7
        %v1075 = vsel %vm789, %v1069, %v1074
        %v1077 = vmul.f32 %v1071, %v1075
        %v1078 = vadd.f32 %v1062, %v1077
        %1079 = vrot.lane.b32.xlu0 %v774, 14
        %v1080 = vpop.permute.xlu0 %1079
        %1081 = vrot.lane.b32.xlu0 %v775, 14
        %v1082 = vpop.permute.xlu0 %1081
        %vm1083 = vcmp.lt.s32.totalorder %v781, 14
        %v1084 = vsel %vm1083, %v1080, %v1082
        %v1085 = vsel %vm1083, %v1082, %v1080
        %s1086 = scalar_lea.vmem [#allocation7], 38
        %v1087 = vld [vmem:[%s1086] sm:$0x3]
        %v1090 = vrot.slane %v1084, 7
        %v1091 = vsel %vm789, %v1085, %v1090
        %v1093 = vmul.f32 %v1087, %v1091
        %v1094 = vadd.f32 %v1078, %v1093
        %1095 = vrot.lane.b32.xlu0 %v774, 13
        %v1096 = vpop.permute.xlu0 %1095
        %1097 = vrot.lane.b32.xlu0 %v775, 13
        %v1098 = vpop.permute.xlu0 %1097
        %vm1099 = vcmp.lt.s32.totalorder %v781, 13
        %v1100 = vsel %vm1099, %v1096, %v1098
        %v1101 = vsel %vm1099, %v1098, %v1096
        %s1102 = scalar_lea.vmem [#allocation7], 40
        %v1103 = vld [vmem:[%s1102] sm:$0x3]
        %v1106 = vrot.slane %v1100, 7
        %v1107 = vsel %vm789, %v1101, %v1106
        %v1109 = vmul.f32 %v1103, %v1107
        %v1110 = vadd.f32 %v1094, %v1109
        %1111 = vrot.lane.b32.xlu0 %v774, 3
        %v1112 = vpop.permute.xlu0 %1111
        %1113 = vrot.lane.b32.xlu0 %v775, 3
        %v1114 = vpop.permute.xlu0 %1113
        %vm1115 = vcmp.lt.s32.totalorder %v781, 3
        %v1116 = vsel %vm1115, %v1112, %v1114
        %v1117 = vsel %vm1115, %v1114, %v1112
        %s1118 = scalar_lea.vmem [#allocation7], 42
        %v1119 = vld [vmem:[%s1118] sm:$0x3]
        %v1122 = vrot.slane %v1116, 7
        %v1123 = vsel %vm789, %v1117, %v1122
        %v1125 = vmul.f32 %v1119, %v1123
        %1126 = vrot.lane.b32.xlu0 %v774, 2
        %v1127 = vpop.permute.xlu0 %1126
        %1128 = vrot.lane.b32.xlu0 %v775, 2
        %v1129 = vpop.permute.xlu0 %1128
        %vm1130 = vcmp.lt.s32.totalorder %v781, 2
        %v1131 = vsel %vm1130, %v1127, %v1129
        %v1132 = vsel %vm1130, %v1129, %v1127
        %s1133 = scalar_lea.vmem [#allocation7], 44
        %v1134 = vld [vmem:[%s1133] sm:$0x3]
        %v1137 = vrot.slane %v1131, 7
        %v1138 = vsel %vm789, %v1132, %v1137
        %v1140 = vmul.f32 %v1134, %v1138
        %v1141 = vadd.f32 %v1125, %v1140
        %1142 = vrot.lane.b32.xlu0 %v774, 1
        %v1143 = vpop.permute.xlu0 %1142
        %1144 = vrot.lane.b32.xlu0 %v775, 1
        %v1145 = vpop.permute.xlu0 %1144
        %vm1146 = vcmp.lt.s32.totalorder %v781, 1
        %v1147 = vsel %vm1146, %v1143, %v1145
        %v1148 = vsel %vm1146, %v1145, %v1143
        %s1149 = scalar_lea.vmem [#allocation7], 46
        %v1150 = vld [vmem:[%s1149] sm:$0x3]
        %v1153 = vrot.slane %v1147, 7
        %v1154 = vsel %vm789, %v1148, %v1153
        %v1156 = vmul.f32 %v1150, %v1154
        %v1157 = vadd.f32 %v1141, %v1156
        %s1158 = scalar_lea.vmem [#allocation7], 48
        %v1159 = vld [vmem:[%s1158] sm:$0x3]
        %v1162 = vrot.slane %v775, 7
        %v1163 = vsel %vm789, %v774, %v1162
        %v1165 = vmul.f32 %v1159, %v1163
        %v1166 = vadd.f32 %v1157, %v1165
        %1167 = vrot.lane.b32.xlu0 %v774, 127
        %v1168 = vpop.permute.xlu0 %1167
        %1169 = vrot.lane.b32.xlu0 %v775, 127
        %v1170 = vpop.permute.xlu0 %1169
        %vm1171 = vcmp.lt.s32.totalorder %v781, 127
        %v1172 = vsel %vm1171, %v1168, %v1170
        %v1173 = vsel %vm1171, %v1170, %v1168
        %s1174 = scalar_lea.vmem [#allocation7], 50
        %v1175 = vld [vmem:[%s1174] sm:$0x3]
        %v1178 = vrot.slane %v1173, 7
        %v1179 = vsel %vm789, %v1172, %v1178
        %v1181 = vmul.f32 %v1175, %v1179
        %v1182 = vadd.f32 %v1166, %v1181
        %1183 = vrot.lane.b32.xlu0 %v774, 126
        %v1184 = vpop.permute.xlu0 %1183
        %1185 = vrot.lane.b32.xlu0 %v775, 126
        %v1186 = vpop.permute.xlu0 %1185
        %vm1187 = vcmp.lt.s32.totalorder %v781, 126
        %v1188 = vsel %vm1187, %v1184, %v1186
        %v1189 = vsel %vm1187, %v1186, %v1184
        %s1190 = scalar_lea.vmem [#allocation7], 52
        %v1191 = vld [vmem:[%s1190] sm:$0x3]
        %v1194 = vrot.slane %v1189, 7
        %v1195 = vsel %vm789, %v1188, %v1194
        %v1197 = vmul.f32 %v1191, %v1195
        %v1198 = vadd.f32 %v1182, %v1197
        %1199 = vrot.lane.b32.xlu0 %v774, 125
        %v1200 = vpop.permute.xlu0 %1199
        %1201 = vrot.lane.b32.xlu0 %v775, 125
        %v1202 = vpop.permute.xlu0 %1201
        %vm1203 = vcmp.lt.s32.totalorder %v781, 125
        %v1204 = vsel %vm1203, %v1200, %v1202
        %v1205 = vsel %vm1203, %v1202, %v1200
        %s1206 = scalar_lea.vmem [#allocation7], 54
        %v1207 = vld [vmem:[%s1206] sm:$0x3]
        %v1210 = vrot.slane %v1205, 7
        %v1211 = vsel %vm789, %v1204, %v1210
        %v1213 = vmul.f32 %v1207, %v1211
        %v1214 = vadd.f32 %v1198, %v1213
        %1215 = vrot.lane.b32.xlu0 %v774, 115
        %v1216 = vpop.permute.xlu0 %1215
        %1217 = vrot.lane.b32.xlu0 %v775, 115
        %v1218 = vpop.permute.xlu0 %1217
        %vm1219 = vcmp.lt.s32.totalorder %v781, 115
        %v1220 = vsel %vm1219, %v1216, %v1218
        %v1221 = vsel %vm1219, %v1218, %v1216
        %s1222 = scalar_lea.vmem [#allocation7], 56
        %v1223 = vld [vmem:[%s1222] sm:$0x3]
        %v1226 = vrot.slane %v1221, 7
        %v1227 = vsel %vm789, %v1220, %v1226
        %v1229 = vmul.f32 %v1223, %v1227
        %1230 = vrot.lane.b32.xlu0 %v774, 114
        %v1231 = vpop.permute.xlu0 %1230
        %1232 = vrot.lane.b32.xlu0 %v775, 114
        %v1233 = vpop.permute.xlu0 %1232
        %vm1234 = vcmp.lt.s32.totalorder %v781, 114
        %v1235 = vsel %vm1234, %v1231, %v1233
        %v1236 = vsel %vm1234, %v1233, %v1231
        %s1237 = scalar_lea.vmem [#allocation7], 58
        %v1238 = vld [vmem:[%s1237] sm:$0x3]
        %v1241 = vrot.slane %v1236, 7
        %v1242 = vsel %vm789, %v1235, %v1241
        %v1244 = vmul.f32 %v1238, %v1242
        %v1245 = vadd.f32 %v1229, %v1244
        %1246 = vrot.lane.b32.xlu0 %v774, 113
        %v1247 = vpop.permute.xlu0 %1246
        %1248 = vrot.lane.b32.xlu0 %v775, 113
        %v1249 = vpop.permute.xlu0 %1248
        %vm1250 = vcmp.lt.s32.totalorder %v781, 113
        %v1251 = vsel %vm1250, %v1247, %v1249
        %v1252 = vsel %vm1250, %v1249, %v1247
        %s1253 = scalar_lea.vmem [#allocation7], 60
        %v1254 = vld [vmem:[%s1253] sm:$0x3]
        %v1257 = vrot.slane %v1252, 7
        %v1258 = vsel %vm789, %v1251, %v1257
        %v1260 = vmul.f32 %v1254, %v1258
        %v1261 = vadd.f32 %v1245, %v1260
        %1262 = vrot.lane.b32.xlu0 %v774, 112
        %v1263 = vpop.permute.xlu0 %1262
        %1264 = vrot.lane.b32.xlu0 %v775, 112
        %v1265 = vpop.permute.xlu0 %1264
        %vm1266 = vcmp.lt.s32.totalorder %v781, 112
        %v1267 = vsel %vm1266, %v1263, %v1265
        %v1268 = vsel %vm1266, %v1265, %v1263
        %s1269 = scalar_lea.vmem [#allocation7], 62
        %v1270 = vld [vmem:[%s1269] sm:$0x3]
        %v1273 = vrot.slane %v1268, 7
        %v1274 = vsel %vm789, %v1267, %v1273
        %v1276 = vmul.f32 %v1270, %v1274
        %v1277 = vadd.f32 %v1261, %v1276
        %1278 = vrot.lane.b32.xlu0 %v774, 111
        %v1279 = vpop.permute.xlu0 %1278
        %1280 = vrot.lane.b32.xlu0 %v775, 111
        %v1281 = vpop.permute.xlu0 %1280
        %vm1282 = vcmp.lt.s32.totalorder %v781, 111
        %v1283 = vsel %vm1282, %v1279, %v1281
        %v1284 = vsel %vm1282, %v1281, %v1279
        %s1285 = scalar_lea.vmem [#allocation7], 64
        %v1286 = vld [vmem:[%s1285] sm:$0x3]
        %v1289 = vrot.slane %v1284, 7
        %v1290 = vsel %vm789, %v1283, %v1289
        %v1292 = vmul.f32 %v1286, %v1290
        %v1293 = vadd.f32 %v1277, %v1292
        %1294 = vrot.lane.b32.xlu0 %v774, 110
        %v1295 = vpop.permute.xlu0 %1294
        %1296 = vrot.lane.b32.xlu0 %v775, 110
        %v1297 = vpop.permute.xlu0 %1296
        %vm1298 = vcmp.lt.s32.totalorder %v781, 110
        %v1299 = vsel %vm1298, %v1295, %v1297
        %v1300 = vsel %vm1298, %v1297, %v1295
        %s1301 = scalar_lea.vmem [#allocation7], 66
        %v1302 = vld [vmem:[%s1301] sm:$0x3]
        %v1305 = vrot.slane %v1300, 7
        %v1306 = vsel %vm789, %v1299, %v1305
        %v1308 = vmul.f32 %v1302, %v1306
        %v1309 = vadd.f32 %v1293, %v1308
        %1310 = vrot.lane.b32.xlu0 %v774, 109
        %v1311 = vpop.permute.xlu0 %1310
        %1312 = vrot.lane.b32.xlu0 %v775, 109
        %v1313 = vpop.permute.xlu0 %1312
        %vm1314 = vcmp.lt.s32.totalorder %v781, 109
        %v1315 = vsel %vm1314, %v1311, %v1313
        %v1316 = vsel %vm1314, %v1313, %v1311
        %s1317 = scalar_lea.vmem [#allocation7], 68
        %v1318 = vld [vmem:[%s1317] sm:$0x3]
        %v1321 = vrot.slane %v1316, 7
        %v1322 = vsel %vm789, %v1315, %v1321
        %v1324 = vmul.f32 %v1318, %v1322
        %v1325 = vadd.f32 %v1309, %v1324
        %1326 = vrot.lane.b32.xlu0 %v774, 99
        %v1327 = vpop.permute.xlu0 %1326
        %1328 = vrot.lane.b32.xlu0 %v775, 99
        %v1329 = vpop.permute.xlu0 %1328
        %vm1330 = vcmp.lt.s32.totalorder %v781, 99
        %v1331 = vsel %vm1330, %v1327, %v1329
        %v1332 = vsel %vm1330, %v1329, %v1327
        %s1333 = scalar_lea.vmem [#allocation7], 70
        %v1334 = vld [vmem:[%s1333] sm:$0x3]
        %v1337 = vrot.slane %v1332, 7
        %v1338 = vsel %vm789, %v1331, %v1337
        %v1340 = vmul.f32 %v1334, %v1338
        %1341 = vrot.lane.b32.xlu0 %v774, 98
        %v1342 = vpop.permute.xlu0 %1341
        %1343 = vrot.lane.b32.xlu0 %v775, 98
        %v1344 = vpop.permute.xlu0 %1343
        %vm1345 = vcmp.lt.s32.totalorder %v781, 98
        %v1346 = vsel %vm1345, %v1342, %v1344
        %v1347 = vsel %vm1345, %v1344, %v1342
        %s1348 = scalar_lea.vmem [#allocation7], 72
        %v1349 = vld [vmem:[%s1348] sm:$0x3]
        %v1352 = vrot.slane %v1347, 7
        %v1353 = vsel %vm789, %v1346, %v1352
        %v1355 = vmul.f32 %v1349, %v1353
        %v1356 = vadd.f32 %v1340, %v1355
        %1357 = vrot.lane.b32.xlu0 %v774, 97
        %v1358 = vpop.permute.xlu0 %1357
        %1359 = vrot.lane.b32.xlu0 %v775, 97
        %v1360 = vpop.permute.xlu0 %1359
        %vm1361 = vcmp.lt.s32.totalorder %v781, 97
        %v1362 = vsel %vm1361, %v1358, %v1360
        %v1363 = vsel %vm1361, %v1360, %v1358
        %s1364 = scalar_lea.vmem [#allocation7], 74
        %v1365 = vld [vmem:[%s1364] sm:$0x3]
        %v1368 = vrot.slane %v1363, 7
        %v1369 = vsel %vm789, %v1362, %v1368
        %v1371 = vmul.f32 %v1365, %v1369
        %v1372 = vadd.f32 %v1356, %v1371
        %1373 = vrot.lane.b32.xlu0 %v774, 96
        %v1374 = vpop.permute.xlu0 %1373
        %1375 = vrot.lane.b32.xlu0 %v775, 96
        %v1376 = vpop.permute.xlu0 %1375
        %vm1377 = vcmp.lt.s32.totalorder %v781, 96
        %v1378 = vsel %vm1377, %v1374, %v1376
        %v1379 = vsel %vm1377, %v1376, %v1374
        %s1380 = scalar_lea.vmem [#allocation7], 76
        %v1381 = vld [vmem:[%s1380] sm:$0x3]
        %v1384 = vrot.slane %v1379, 7
        %v1385 = vsel %vm789, %v1378, %v1384
        %v1387 = vmul.f32 %v1381, %v1385
        %v1388 = vadd.f32 %v1372, %v1387
        %1389 = vrot.lane.b32.xlu0 %v774, 95
        %v1390 = vpop.permute.xlu0 %1389
        %1391 = vrot.lane.b32.xlu0 %v775, 95
        %v1392 = vpop.permute.xlu0 %1391
        %vm1393 = vcmp.lt.s32.totalorder %v781, 95
        %v1394 = vsel %vm1393, %v1390, %v1392
        %v1395 = vsel %vm1393, %v1392, %v1390
        %s1396 = scalar_lea.vmem [#allocation7], 78
        %v1397 = vld [vmem:[%s1396] sm:$0x3]
        %v1400 = vrot.slane %v1395, 7
        %v1401 = vsel %vm789, %v1394, %v1400
        %v1403 = vmul.f32 %v1397, %v1401
        %v1404 = vadd.f32 %v1388, %v1403
        %1405 = vrot.lane.b32.xlu0 %v774, 94
        %v1406 = vpop.permute.xlu0 %1405
        %1407 = vrot.lane.b32.xlu0 %v775, 94
        %v1408 = vpop.permute.xlu0 %1407
        %vm1409 = vcmp.lt.s32.totalorder %v781, 94
        %v1410 = vsel %vm1409, %v1406, %v1408
        %v1411 = vsel %vm1409, %v1408, %v1406
        %s1412 = scalar_lea.vmem [#allocation7], 80
        %v1413 = vld [vmem:[%s1412] sm:$0x3]
        %v1416 = vrot.slane %v1411, 7
        %v1417 = vsel %vm789, %v1410, %v1416
        %v1419 = vmul.f32 %v1413, %v1417
        %v1420 = vadd.f32 %v1404, %v1419
        %1421 = vrot.lane.b32.xlu0 %v774, 93
        %v1422 = vpop.permute.xlu0 %1421
        %1423 = vrot.lane.b32.xlu0 %v775, 93
        %v1424 = vpop.permute.xlu0 %1423
        %vm1425 = vcmp.lt.s32.totalorder %v781, 93
        %v1426 = vsel %vm1425, %v1422, %v1424
        %v1427 = vsel %vm1425, %v1424, %v1422
        %s1428 = scalar_lea.vmem [#allocation7], 82
        %v1429 = vld [vmem:[%s1428] sm:$0x3]
        %v1432 = vrot.slane %v1427, 7
        %v1433 = vsel %vm789, %v1426, %v1432
        %v1435 = vmul.f32 %v1429, %v1433
        %v1436 = vadd.f32 %v1420, %v1435
        %1437 = vrot.lane.b32.xlu0 %v774, 83
        %v1438 = vpop.permute.xlu0 %1437
        %1439 = vrot.lane.b32.xlu0 %v775, 83
        %v1440 = vpop.permute.xlu0 %1439
        %vm1441 = vcmp.lt.s32.totalorder %v781, 83
        %v1442 = vsel %vm1441, %v1438, %v1440
        %v1443 = vsel %vm1441, %v1440, %v1438
        %s1444 = scalar_lea.vmem [#allocation7], 84
        %v1445 = vld [vmem:[%s1444] sm:$0x3]
        %v1448 = vrot.slane %v1443, 7
        %v1449 = vsel %vm789, %v1442, %v1448
        %v1451 = vmul.f32 %v1445, %v1449
        %1452 = vrot.lane.b32.xlu0 %v774, 82
        %v1453 = vpop.permute.xlu0 %1452
        %1454 = vrot.lane.b32.xlu0 %v775, 82
        %v1455 = vpop.permute.xlu0 %1454
        %vm1456 = vcmp.lt.s32.totalorder %v781, 82
        %v1457 = vsel %vm1456, %v1453, %v1455
        %v1458 = vsel %vm1456, %v1455, %v1453
        %s1459 = scalar_lea.vmem [#allocation7], 86
        %v1460 = vld [vmem:[%s1459] sm:$0x3]
        %v1463 = vrot.slane %v1458, 7
        %v1464 = vsel %vm789, %v1457, %v1463
        %v1466 = vmul.f32 %v1460, %v1464
        %v1467 = vadd.f32 %v1451, %v1466
        %1468 = vrot.lane.b32.xlu0 %v774, 81
        %v1469 = vpop.permute.xlu0 %1468
        %1470 = vrot.lane.b32.xlu0 %v775, 81
        %v1471 = vpop.permute.xlu0 %1470
        %vm1472 = vcmp.lt.s32.totalorder %v781, 81
        %v1473 = vsel %vm1472, %v1469, %v1471
        %v1474 = vsel %vm1472, %v1471, %v1469
        %s1475 = scalar_lea.vmem [#allocation7], 88
        %v1476 = vld [vmem:[%s1475] sm:$0x3]
        %v1479 = vrot.slane %v1474, 7
        %v1480 = vsel %vm789, %v1473, %v1479
        %v1482 = vmul.f32 %v1476, %v1480
        %v1483 = vadd.f32 %v1467, %v1482
        %1484 = vrot.lane.b32.xlu0 %v774, 80
        %v1485 = vpop.permute.xlu0 %1484
        %1486 = vrot.lane.b32.xlu0 %v775, 80
        %v1487 = vpop.permute.xlu0 %1486
        %vm1488 = vcmp.lt.s32.totalorder %v781, 80
        %v1489 = vsel %vm1488, %v1485, %v1487
        %v1490 = vsel %vm1488, %v1487, %v1485
        %s1491 = scalar_lea.vmem [#allocation7], 90
        %v1492 = vld [vmem:[%s1491] sm:$0x3]
        %v1495 = vrot.slane %v1490, 7
        %v1496 = vsel %vm789, %v1489, %v1495
        %v1498 = vmul.f32 %v1492, %v1496
        %v1499 = vadd.f32 %v1483, %v1498
        %1500 = vrot.lane.b32.xlu0 %v774, 79
        %v1501 = vpop.permute.xlu0 %1500
        %1502 = vrot.lane.b32.xlu0 %v775, 79
        %v1503 = vpop.permute.xlu0 %1502
        %vm1504 = vcmp.lt.s32.totalorder %v781, 79
        %v1505 = vsel %vm1504, %v1501, %v1503
        %v1506 = vsel %vm1504, %v1503, %v1501
        %s1507 = scalar_lea.vmem [#allocation7], 92
        %v1508 = vld [vmem:[%s1507] sm:$0x3]
        %v1511 = vrot.slane %v1506, 7
        %v1512 = vsel %vm789, %v1505, %v1511
        %v1514 = vmul.f32 %v1508, %v1512
        %v1515 = vadd.f32 %v1499, %v1514
        %1516 = vrot.lane.b32.xlu0 %v774, 78
        %v1517 = vpop.permute.xlu0 %1516
        %1518 = vrot.lane.b32.xlu0 %v775, 78
        %v1519 = vpop.permute.xlu0 %1518
        %vm1520 = vcmp.lt.s32.totalorder %v781, 78
        %v1521 = vsel %vm1520, %v1517, %v1519
        %v1522 = vsel %vm1520, %v1519, %v1517
        %s1523 = scalar_lea.vmem [#allocation7], 94
        %v1524 = vld [vmem:[%s1523] sm:$0x3]
        %v1527 = vrot.slane %v1522, 7
        %v1528 = vsel %vm789, %v1521, %v1527
        %v1530 = vmul.f32 %v1524, %v1528
        %v1531 = vadd.f32 %v1515, %v1530
        %1532 = vrot.lane.b32.xlu0 %v774, 77
        %v1533 = vpop.permute.xlu0 %1532
        %1534 = vrot.lane.b32.xlu0 %v775, 77
        %v1535 = vpop.permute.xlu0 %1534
        %vm1536 = vcmp.lt.s32.totalorder %v781, 77
        %v1537 = vsel %vm1536, %v1533, %v1535
        %v1538 = vsel %vm1536, %v1535, %v1533
        %s1539 = scalar_lea.vmem [#allocation7], 96
        %v1540 = vld [vmem:[%s1539] sm:$0x3]
        %v1543 = vrot.slane %v1538, 7
        %v1544 = vsel %vm789, %v1537, %v1543
        %v1546 = vmul.f32 %v1540, %v1544
        %v1547 = vadd.f32 %v1531, %v1546
        %v1548 = vadd.f32 %v888, %v999
        %v1549 = vadd.f32 %v1110, %v1214
        %v1550 = vadd.f32 %v1325, %v1436
        %v1551 = vadd.f32 %v1548, %v1549
        %v1552 = vadd.f32 %v1550, %v1547
        %v1553 = vadd.f32 %v1551, %v1552
        %v1554 = vxor.u32 %v1553, 2147483648
        %v1555 = vmul.f32 %v1554, 1.442695
        %v1556 = vpow.pop %v1555
        %v1557 = vadd.f32 %v1556, 1.0
        %v1558 = vrcp.pop %v1557
        %v1559 = vmul.f32 %v1557, %v1558
        %v1560 = vsub.f32 1.0, %v1559
        %v1561 = vmul.f32 %v1558, %v1560
        %v1562 = vadd.f32 %v1558, %v1561
        %vm1563 = vweird.f32 %v1557
        %vm1564 = vweird.f32 %v1558
        %vm1565 = vmor %vm1563, %vm1564
        %v1566 = vsel %vm1565, %v1558, %v1562
        %v1567 = vand.u32 2147483647, %v1557
        %vm1568 = vcmp.eq.f32.partialorder %v1567, 8.507059e+37
        %v1569 = vand.u32 %v1557, 2147483648
        %v1570 = vor.u32 1.1754944e-38, %v1569
        %v1571 = vsel %vm1568, %v1570, %v1566
        %v1572 = vmul.f32 1.0, %v1571
        %v1573 = vld [vmem:[%s9] sm:$0xff]
        %v1574 = vld [vmem:[%s9 + $0x8] sm:$0xff]
        %v1575 = vperm.slane %v694, 0
        %v1576 = vmul.f32 %v1573, %v1575
        %v1577 = vmul.f32 %v1574, %v1575
        %v1578 = vld [vmem:[%s10] sm:$0xff]
        %v1579 = vld [vmem:[%s10 + $0x8] sm:$0xff]
        %v1580 = vperm.slane %v737, 0
        %v1581 = vmul.f32 %v1578, %v1580
        %v1582 = vmul.f32 %v1579, %v1580
        %v1584 = vperm.slane %v1572, 0
        %v1585 = vperm.slane %v1572, 1
        %v1588 = vmul.f32 %v492, %v1584
        %v1589 = vmul.f32 %v493, %v1585
        %v1590 = vmul.f32 %v494, %v1584
        %v1591 = vmul.f32 %v495, %v1585
        %v1592 = vmul.f32 %v496, %v1584
        %v1593 = vmul.f32 %v497, %v1585
        %v1594 = vmul.f32 %v498, %v1584
        %v1595 = vmul.f32 %v499, %v1585
        %vm1596 = vcmask 130048
        %v1598 = vsel %vm1596, %v1581, 0
        %v1601 = vsel %vm1596, %v1582, 0
        %1603 = vmatpush.msra.mxu0 0.0
        %1604 = vmatpush.msra.mxu0 0.0
        %1605 = vmatpush.msra.mxu0 0.0
        %1606 = vmatpush.msra.mxu0 0.0
        %1607 = vmatpush.msra.mxu0 0.0
        %1608 = vmatpush.msra.mxu0 0.0
        %1609 = vmatpush.msra.mxu0 0.0
        %1610 = vmatpush.msra.mxu0 0.0
        %1611 = vmatpush.msra.mxu0 0.0
        %1612 = vmatpush.msra.mxu0 0.0
        %1613 = vmatpush.msra.mxu0 0.0
        %1614 = vmatpush.msra.mxu0 0.0
        %1615 = vmatpush.msra.mxu0 0.0
        %1616 = vmatpush.msra.mxu0 0.0
        %1617 = vmatpush.msra.mxu0 %v1594
        %1618 = vmatpush.msra.mxu0 %v1592
        %1619 = vmatmul.f32.gmra.mxu0 %v1598
        %v1620 = vpop.f32.mrf.mxu0
        %v1621 = vadd.f32 0.0, %v1620
        %1622 = vmatmul.f32.gmra.mxu0 %v1601
        %v1623 = vpop.f32.mrf.mxu0
        %v1624 = vadd.f32 0.0, %v1623
        %1625 = vdwg.mxu0
        %1626 = vmatpush.msra.mxu0 0.0
        %1627 = vmatpush.msra.mxu0 0.0
        %1628 = vmatpush.msra.mxu0 0.0
        %1629 = vmatpush.msra.mxu0 0.0
        %1630 = vmatpush.msra.mxu0 0.0
        %1631 = vmatpush.msra.mxu0 0.0
        %1632 = vmatpush.msra.mxu0 0.0
        %1633 = vmatpush.msra.mxu0 0.0
        %1634 = vmatpush.msra.mxu0 0.0
        %1635 = vmatpush.msra.mxu0 0.0
        %1636 = vmatpush.msra.mxu0 0.0
        %1637 = vmatpush.msra.mxu0 0.0
        %1638 = vmatpush.msra.mxu0 0.0
        %1639 = vmatpush.msra.mxu0 0.0
        %1640 = vmatpush.msra.mxu0 %v1595
        %1641 = vmatpush.msra.mxu0 %v1593
        %1642 = vmatmul.f32.gmra.mxu0 %v1598
        %v1643 = vpop.f32.mrf.mxu0
        %v1644 = vadd.f32 0.0, %v1643
        %1645 = vmatmul.f32.gmra.mxu0 %v1601
        %v1646 = vpop.f32.mrf.mxu0
        %v1647 = vadd.f32 0.0, %v1646
        %1648 = vdwg.mxu0
        %v1650 = vsel %vm1596, %v1576, 0
        %v1653 = vsel %vm1596, %v1577, 0
        %1655 = vmatpush.msra.mxu0 0.0
        %1656 = vmatpush.msra.mxu0 0.0
        %1657 = vmatpush.msra.mxu0 0.0
        %1658 = vmatpush.msra.mxu0 0.0
        %1659 = vmatpush.msra.mxu0 0.0
        %1660 = vmatpush.msra.mxu0 0.0
        %1661 = vmatpush.msra.mxu0 0.0
        %1662 = vmatpush.msra.mxu0 0.0
        %1663 = vmatpush.msra.mxu0 0.0
        %1664 = vmatpush.msra.mxu0 0.0
        %1665 = vmatpush.msra.mxu0 0.0
        %1666 = vmatpush.msra.mxu0 0.0
        %1667 = vmatpush.msra.mxu0 0.0
        %1668 = vmatpush.msra.mxu0 0.0
        %1669 = vmatpush.msra.mxu0 %v1590
        %1670 = vmatpush.msra.mxu0 %v1588
        %1671 = vmatmul.f32.gmra.mxu0 %v1650
        %v1672 = vpop.f32.mrf.mxu0
        %v1673 = vadd.f32 %v1621, %v1672
        %1674 = vmatmul.f32.gmra.mxu0 %v1653
        %v1675 = vpop.f32.mrf.mxu0
        %v1676 = vadd.f32 %v1624, %v1675
        %1677 = vdwg.mxu0
        %1678 = vmatpush.msra.mxu0 0.0
        %1679 = vmatpush.msra.mxu0 0.0
        %1680 = vmatpush.msra.mxu0 0.0
        %1681 = vmatpush.msra.mxu0 0.0
        %1682 = vmatpush.msra.mxu0 0.0
        %1683 = vmatpush.msra.mxu0 0.0
        %1684 = vmatpush.msra.mxu0 0.0
        %1685 = vmatpush.msra.mxu0 0.0
        %1686 = vmatpush.msra.mxu0 0.0
        %1687 = vmatpush.msra.mxu0 0.0
        %1688 = vmatpush.msra.mxu0 0.0
        %1689 = vmatpush.msra.mxu0 0.0
        %1690 = vmatpush.msra.mxu0 0.0
        %1691 = vmatpush.msra.mxu0 0.0
        %1692 = vmatpush.msra.mxu0 %v1591
        %1693 = vmatpush.msra.mxu0 %v1589
        %1694 = vmatmul.f32.gmra.mxu0 %v1650
        %v1695 = vpop.f32.mrf.mxu0
        %v1696 = vadd.f32 %v1644, %v1695
        %1697 = vmatmul.f32.gmra.mxu0 %v1653
        %v1698 = vpop.f32.mrf.mxu0
        %v1699 = vadd.f32 %v1647, %v1698
        %1700 = vdwg.mxu0
        %v1701 = vld [vmem:[%s11] sm:$0xff]
        %v1702 = vld [vmem:[%s11 + $0x8] sm:$0xff]
        %1704 = vset.pattern.permute.xlu0 0
        %1705 = vperm.xlu0 %1704, %v1701
        %v1706 = vpop.permute.xlu0 %1705
        %1709 = vset.pattern.permute.xlu0 0
        %1710 = vperm.xlu0 %1709, %v1702
        %v1711 = vpop.permute.xlu0 %1710
        %v1713 = vadd.f32 %v1673, %v1706
        %v1714 = vadd.f32 %v1696, %v1706
        %v1715 = vadd.f32 %v1676, %v1711
        %v1716 = vadd.f32 %v1699, %v1711
        %v1717 = vmax.f32 %v1713, 0.0
        %v1718 = vmax.f32 %v1714, 0.0
        %v1719 = vmax.f32 %v1715, 0.0
        %v1720 = vmax.f32 %v1716, 0.0
        %1721 = vst [vmem:[%s491] sm:$0xff] %v1717
        %1722 = vst [vmem:[%s491 + $0x8] sm:$0xff] %v1718
        %1723 = vst [vmem:[%s491 + $0x10] sm:$0xff] %v1719
        %1724 = vst [vmem:[%s491 + $0x18] sm:$0xff] %v1720
        %s1725 = sand.u32 %s302, 1
        %s1726 = scalar_lea.sflag [#allocation4], %s1725
        %s1727 = sand.u32 %s302, 1
        %s1728 = smul.addr %s1727, 32
        %s1729 = scalar_lea.vmem [#allocation8], %s1728
        // Predicated region
        $region81: #{tpu_custom_call.1} parent=67 // pred_check
          %p1730 = pneg %p312
        $region82: #{tpu_custom_call.1} parent=67 // pred_check_branch
          %1732 = sbr.rel (%p1730) target = $region84
        $region83: #{tpu_custom_call.1} parent=67 // pred_region
          %1734 = vsyncadd %s1726, 0
          %s1735 = smul.addr %s32, 4
          %s1736 = smul.addr %s1735, 8
          %s1737 = scalar_lea.hbm %s12, %s1736
          %s1738 = sshll.u32 %s1729, 4
          %s1739 = int_to_ptr.vmem [resolvable:$true] %s1738
          %s1740 = sshll.u32 %s1737, 4
          %s1741 = int_to_ptr.hbm [resolvable:$true] %s1740
          %1746 = dma.vmem_to_hbm [thread:$0]  %s1739, 512, %s1741, %s1726, 256, 256, 16
        $region84: #{tpu_custom_call.1} parent=67 // pred_fallthru
          _
      $region68: #{tpu_custom_call.1} parent=5 // pred_fallthru
        _
      %p1747 = scmp.le.s32.totalorder 2, %s27
      // Predicated region
      $region85: #{tpu_custom_call.1} parent=5 // pred_check
        %p1748 = pneg %p1747
      $region86: #{tpu_custom_call.1} parent=5 // pred_check_branch
        %1750 = sbr.rel (%p1748) target = $region88
      $region87: #{tpu_custom_call.1} parent=5 // pred_region
        %s1751 = ssub.s32 %s27, 2
        // Predicated region
        $region89: #{tpu_custom_call.1} parent=87 // pred_check
          %p1752 = pneg %p318
        $region90: #{tpu_custom_call.1} parent=87 // pred_check_branch
          %1754 = sbr.rel (%p1752) target = $region92
        $region91: #{tpu_custom_call.1} parent=87 // pred_region
          %s1755 = sand.u32 %s303, 1
          %s1756 = scalar_lea.sflag [#allocation4], %s1755
          %s1757 = sand.u32 %s303, 1
          %s1758 = smul.addr %s1757, 32
          %s1759 = scalar_lea.vmem [#allocation8], %s1758
          %1761 = dma.done %s1756, 512
        $region92: #{tpu_custom_call.1} parent=87 // pred_fallthru
          _
      $region88: #{tpu_custom_call.1} parent=5 // pred_fallthru
        _
    $region6: #{tpu_custom_call.1} parent=1 // loop_footer
      %s31 = sadd.s32 1, %s27
    $region7: #{tpu_custom_call.1} parent=1 // loop_footer_branch
      %26 = sbr.rel target = $region3
    $region8: #{tpu_custom_call.1} parent=1 // loop_exit
      _
    %1762 = vsyncpa [#allocation3], 1
    %s1763 = scalar_lea.sflag [#allocation3], 1
    %1764 = vsyncpa %s1763, 1
    %1765 = vsyncpa [#allocation6], 1
    %s1766 = scalar_lea.sflag [#allocation6], 1
    %1767 = vsyncpa %s1766, 1
    %1768 = vsyncpa [#allocation4], 1
    %s1769 = scalar_lea.sflag [#allocation4], 1
    %1770 = vsyncpa %s1769, 1

</llo_original>
